<compile_context>
chip_gen: v6e
topology: v6e:2x2x1
jax: 0.10.0
libtpu: 0.0.40
codegen_flags: <defaults>
</compile_context>

<pallas_src>
import functools
import math

import jax
import jax.numpy as jnp
import numpy as np
from jax import lax
from jax.experimental import pallas as pl
from jax.experimental.pallas import tpu as pltpu


_OUT_LANES = 128


def _cf_sizes(img_size: int):
    # mirrors: n = floor(log2(p)); sizes = 2 ** arange(n, 1, -1)  -> ints
    n = int(math.floor(math.log2(img_size)))
    return [2 ** k for k in range(n, 1, -1)]


def _cf_loss_kernel(pred_ref, true_ref, rowp_ref, colpb_ref, rall_ref, callb_ref,
                    out_ref, box_ref, *, n_imgs, n_bands, fine_per_band,
                    wo4, pw, finest_base, coarse_specs):
    """Per-(image block, row band) partial reductions for CF-Loss.

    pred_ref  : (B, 3, R, W)    logits block (f32 or bf16)
    true_ref  : (B, R, W)       int8 labels in {0, 1, 2}
    rowp_ref  : (hb, R)         bf16 0/1 band row-pool matrix (4-row boxes)
    colpb_ref : (4W, 4*Wo4)     bf16 block-diagonal 0/1 col-pool matrix
    rall_ref  : (PH, Ho4)       f32 stacked coarse row-aggregation matrix
    callb_ref : (4*Wo4, 4*PW)   f32 block-diag stacked coarse col-aggregation
    out_ref   : (1, 8, 128)     f32 lane-dense result row (accumulated over bands)
    box_ref   : (B, Ho4, 4*Wo4) f32 finest-scale box-sum scratch (multi-band only)
    """
    band = pl.program_id(1)
    hb = fine_per_band

    @pl.when(band == 0)
    def _init():
        out_ref[...] = jnp.zeros_like(out_ref)

    labels = true_ref[...].astype(jnp.int32)           # (B, R, W)
    raw = pred_ref[...]                                 # (B, 3, R, W)

    # ---- fused softmax / one-hot / cross-entropy / vessel-density ----
    x0 = raw[:, 0].astype(jnp.float32)
    x1 = raw[:, 1].astype(jnp.float32)
    x2 = raw[:, 2].astype(jnp.float32)
    m = jnp.maximum(jnp.maximum(x0, x1), x2)
    e0 = jnp.exp(x0 - m)
    e1 = jnp.exp(x1 - m)
    e2 = jnp.exp(x2 - m)
    z = e0 + e1 + e2
    inv_z = pl.reciprocal(z, approx=True)               # EUP slot, ~2^-12 rel err
    p0 = e0 * inv_z
    p1 = e1 * inv_z
    p2 = e2 * inv_z
    oh0 = (labels == 0).astype(jnp.float32)
    oh1 = (labels == 1).astype(jnp.float32)

    # CE numerator: sum over pixels of (logsumexp - logit_at_label)
    x_at = jnp.where(labels == 0, x0, jnp.where(labels == 1, x1, x2))
    ce_sum = jnp.sum((m + jnp.log(z)) - x_at)
    # vessel-density numerator (channels 1, 2); one-hot ch2 folded inline
    vd_sum = jnp.sum(jnp.abs(oh1 - p1)
                     + jnp.abs((labels == 2).astype(jnp.float32) - p2))

    lane = lax.broadcasted_iota(jnp.int32, out_ref.shape, 2)
    out_ref[...] += (jnp.where(lane == 0, ce_sum, 0.0)
                     + jnp.where(lane == 1, vd_sum, 0.0))

    # ---- finest-scale (4x4) box SUMS: one fused wide MXU matmul pair / image ----
    # Inside the torch get_count, "pred" == one-hot(true) and "true" == softmax
    # (the forward swaps the tuple); only channels 0 and 1 are used.
    rowp = rowp_ref[...]                                # (hb, R)   bf16
    colpb = colpb_ref[...]                              # (4W, 4Wo4) bf16

    s4_now = []
    for b in range(n_imgs):
        # lane-stacked RHS: [ onehot0 | onehot1 | softmax0 | softmax1 ]
        rhs = jnp.concatenate([oh0[b], oh1[b], p0[b], p1[b]],
                              axis=-1).astype(jnp.bfloat16)          # (R, 4W)
        t = jnp.dot(rowp, rhs, preferred_element_type=jnp.float32)   # (hb, 4W)
        s_band = jnp.dot(t.astype(jnp.bfloat16), colpb,
                         preferred_element_type=jnp.float32)         # (hb, 4Wo4)
        if n_bands == 1:
            s4_now.append(s_band)
        else:
            start = pl.multiple_of(band * hb, 8)        # hb % 8 == 0 by construction
            box_ref[b, pl.ds(start, hb), :] = s_band

    # ---- last band: derive every scale from the finest box sums, emit lanes ----
    @pl.when(band == n_bands - 1)
    def _finalize():
        fin_row = jnp.zeros(out_ref.shape, jnp.float32)
        for b in range(n_imgs):
            s4 = s4_now[b] if n_bands == 1 else box_ref[b]           # (Ho4, 4Wo4)
            vals = {}

            # finest scale (s = 4): |avg diff| = |sum diff| / 16; count = #(softmax>0)
            oh_half = s4[:, :2 * wo4]
            sm_half = s4[:, 2 * wo4:]
            d4 = jnp.abs(oh_half - sm_half)
            pos4 = (sm_half > 0).astype(jnp.float32)
            cc4 = lax.broadcasted_iota(jnp.int32, d4.shape, 1)
            for c in range(2):
                msk = (cc4 >= c * wo4) & (cc4 < (c + 1) * wo4)
                vals[finest_base + c] = jnp.sum(jnp.where(msk, d4, 0.0)) * (1.0 / 16.0)
                vals[finest_base + 2 + c] = jnp.sum(jnp.where(msk, pos4, 0.0))

            # coarser scales: one aggregation matmul pair, then masked reductions
            if coarse_specs:
                rall = rall_ref[...]
                callb = callb_ref[...]
                t2 = jnp.dot(rall, s4, preferred_element_type=jnp.float32)
                pa = jnp.dot(t2, callb, preferred_element_type=jnp.float32)
                ohc = pa[:, :2 * pw]
                smc = pa[:, 2 * pw:]
                dc = jnp.abs(ohc - smc)
                posc = (smc > 0).astype(jnp.float32)
                rr = lax.broadcasted_iota(jnp.int32, dc.shape, 0)
                cc = lax.broadcasted_iota(jnp.int32, dc.shape, 1)
                for (roff, ho, coff, wo, s, base) in coarse_specs:
                    inv = 1.0 / float(s * s)
                    for c in range(2):
                        cs = c * pw + coff
                        msk = ((rr >= roff) & (rr < roff + ho)
                               & (cc >= cs) & (cc < cs + wo))
                        vals[base + c] = jnp.sum(jnp.where(msk, dc, 0.0)) * inv
                        vals[base + 2 + c] = jnp.sum(jnp.where(msk, posc, 0.0))

            for j, v in vals.items():
                fin_row += jnp.where(lane == j, v, 0.0)
        out_ref[...] += fin_row


def cf_loss(pred, true, *, img_size, beta, alpha, gamma,
            pred_store_dtype=jnp.float32, band_rows=None, images_per_step=None):
    """CF-Loss forward.  pred: (N,3,H,W) logits, true: (N,H,W) int labels."""
    N, C, H, W = pred.shape
    assert C == 3 and H == img_size and W == img_size
    sizes = _cf_sizes(img_size)
    assert sizes and sizes[-1] == 4, "img_size must be >= 4"
    L = len(sizes)
    M = 2 + 4 * L
    assert M <= _OUT_LANES

    Ho4 = -(-H // 4)
    Wo4 = -(-W // 4)
    itemsize = jnp.dtype(pred_store_dtype).itemsize

    # ---- row-band selection: bound the per-step live set (v7x has 64 MiB VMEM) ----
    per_row_bytes = (3 * W * itemsize + W) + 22 * W * 4        # blocks + f32 temps
    if band_rows is None:
        band_rows = H
        while (band_rows % 2 == 0 and band_rows > 64
               and band_rows * per_row_bytes > (20 << 20)):
            band_rows //= 2
    # sanity: band must divide H, keep 4-row boxes whole and sublane-aligned box
    # accumulator stores (hb % 8 == 0).  Otherwise fall back to a single band.
    # TODO(synk): huge non-power-of-two images falling back to one band may still
    #             exceed VMEM; they would need a masked last band.
    if band_rows >= H or H % band_rows != 0 or band_rows % 32 != 0:
        band_rows = H
    num_bands = H // band_rows
    hb = Ho4 if num_bands == 1 else band_rows // 4
    assert num_bands == 1 or num_bands * hb == Ho4

    # ---- images per grid step (amortise step overhead for small images) ----
    B = 1
    if images_per_step is not None:
        B = int(images_per_step)
    elif num_bands == 1:
        per_img_bytes = (3 * H * W * itemsize + H * W) + 22 * H * W * 4
        for cand in range(min(N, 8), 0, -1):
            if N % cand == 0 and cand * per_img_bytes <= (8 << 20):
                B = cand
                break
    if num_bands > 1:
        B = 1                                   # banding and batching are exclusive
    assert N % B == 0
    G = N // B

    # ---- pooling matrices (hoisted out of the grid loop; 0/1 so exact in bf16) ----
    rowp_np = np.zeros((hb, band_rows), np.float32)
    rowp_np[np.arange(band_rows) // 4, np.arange(band_rows)] = 1.0
    colp_np = np.zeros((W, Wo4), np.float32)
    colp_np[np.arange(W), np.arange(W) // 4] = 1.0
    colpb_np = np.zeros((4 * W, 4 * Wo4), np.float32)     # block-diag, 4 streams
    for k in range(4):
        colpb_np[k * W:(k + 1) * W, k * Wo4:(k + 1) * Wo4] = colp_np
    rowp = jnp.asarray(rowp_np, jnp.bfloat16)
    colpb = jnp.asarray(colpb_np, jnp.bfloat16)

    # ---- stacked coarse-scale aggregation (fine 4x4 blocks -> s x s blocks) ----
    coarse_sizes = sizes[:-1]
    hos = [-(-H // s) for s in coarse_sizes]
    wos = [-(-W // s) for s in coarse_sizes]
    PH = max(sum(hos), 1)
    PW = max(sum(wos), 1)
    rall_np = np.zeros((PH, Ho4), np.float32)
    call_np = np.zeros((Wo4, PW), np.float32)
    coarse_specs = []
    roff = coff = 0
    for i, s in enumerate(coarse_sizes):
        g = s // 4                              # fine blocks per coarse block
        rall_np[roff + np.arange(Ho4) // g, np.arange(Ho4)] = 1.0
        call_np[np.arange(Wo4), coff + np.arange(Wo4) // g] = 1.0
        coarse_specs.append((roff, hos[i], coff, wos[i], s, 2 + 4 * i))
        roff += hos[i]
        coff += wos[i]
    callb_np = np.zeros((4 * Wo4, 4 * PW), np.float32)    # block-diag, 4 streams
    for k in range(4):
        callb_np[k * Wo4:(k + 1) * Wo4, k * PW:(k + 1) * PW] = call_np
    rall = jnp.asarray(rall_np)
    callb = jnp.asarray(callb_np)

    pred_in = pred.astype(pred_store_dtype)
    true_in = true.astype(jnp.int8)             # 4x less label DMA

    # ---- generation-aware scoped-VMEM budget ----
    try:
        vmem_cap = int(pltpu.get_tpu_info().vmem_capacity_bytes)
    except Exception:
        vmem_cap = 64 << 20                     # v7x per-TensorCore capacity
    block_bytes = 2 * (B * 3 * band_rows * W * itemsize
                       + B * band_rows * W
                       + (hb * band_rows + 4 * W * 4 * Wo4) * 2
                       + (PH * Ho4 + 4 * Wo4 * 4 * PW) * 4
                       + 8 * _OUT_LANES * 4)
    temp_bytes = B * (22 * band_rows * W * 4
                      + 6 * band_rows * 4 * W
                      + 16 * (Ho4 * 4 * Wo4 + PH * 4 * PW))
    scratch_bytes = B * Ho4 * 4 * Wo4 * 4
    want = block_bytes + temp_bytes + scratch_bytes + (4 << 20)
    cap_budget = max(vmem_cap - (8 << 20), 16 << 20)
    vmem_limit = int(min(max(want, 16 << 20), cap_budget))

    kernel = functools.partial(
        _cf_loss_kernel,
        n_imgs=B,
        n_bands=num_bands,
        fine_per_band=hb,
        wo4=Wo4,
        pw=PW,
        finest_base=2 + 4 * (L - 1),
        coarse_specs=tuple(coarse_specs),
    )

    partials = pl.pallas_call(
        kernel,
        out_shape=jax.ShapeDtypeStruct((G, 8, _OUT_LANES), jnp.float32),
        grid_spec=pltpu.PrefetchScalarGridSpec(
            num_scalar_prefetch=0,
            grid=(G, num_bands),
            in_specs=[
                pl.BlockSpec((B, 3, band_rows, W), lambda g, r: (g, 0, r, 0)),
                pl.BlockSpec((B, band_rows, W), lambda g, r: (g, r, 0)),
                pl.BlockSpec((hb, band_rows), lambda g, r: (0, 0)),       # resident
                pl.BlockSpec((4 * W, 4 * Wo4), lambda g, r: (0, 0)),      # resident
                pl.BlockSpec((PH, Ho4), lambda g, r: (0, 0)),             # resident
                pl.BlockSpec((4 * Wo4, 4 * PW), lambda g, r: (0, 0)),     # resident
            ],
            out_specs=pl.BlockSpec((1, 8, _OUT_LANES), lambda g, r: (g, 0, 0)),
            scratch_shapes=[pltpu.VMEM((B, Ho4, 4 * Wo4), jnp.float32)],
        ),
        compiler_params=pltpu.CompilerParams(
            dimension_semantics=("parallel", "arbitrary"),
            vmem_limit_bytes=vmem_limit),
    )(pred_in, true_in, rowp, colpb, rall, callb)

    # ---- cheap scalar glue on the tiny (G, M) partial-sum table ----
    tot = jnp.sum(partials[:, 0, :M], axis=0)
    area = float(N * H * W)
    loss_ce = tot[0] / area                     # CrossEntropyLoss (mean reduction)
    loss_vd = tot[1] / area                     # vessel-density term

    eps = 1e-6
    sizes_f = jnp.asarray(sizes, dtype=jnp.float32)
    count0 = jnp.stack([tot[2 + 4 * i] / (tot[2 + 4 * i + 2] + eps)
                        for i in range(L)])
    count1 = jnp.stack([tot[2 + 4 * i + 1] / (tot[2 + 4 * i + 3] + eps)
                        for i in range(L)])
    # torch broadcasts the same scalar count over the batch dim of `counts`,
    # so its batched sum is N * per-scale sum.
    artery = jnp.sqrt(jnp.sum(sizes_f * count0 ** 2) * N)
    vein = jnp.sqrt(jnp.sum(sizes_f * count1 ** 2) * N)
    size_t = jnp.sqrt(jnp.sum(sizes_f ** 2))
    loss_fd = (artery + vein) / size_t / N

    return beta * loss_ce + alpha * loss_fd + gamma * loss_vd


def cf_loss_ref(pred, true, *, img_size, beta, alpha, gamma):
    """Pure-JAX reference (power-of-two img_size; mirrors the torch module)."""
    N, C, H, W = pred.shape
    sizes = _cf_sizes(img_size)
    log_softmax = jax.nn.log_softmax(pred, axis=1)
    softmax = jax.nn.softmax(pred, axis=1)
    onehot = jax.nn.one_hot(true, 3, axis=1, dtype=jnp.float32)     # (N,3,H,W)
    loss_ce = -jnp.mean(jnp.sum(onehot * log_softmax, axis=1))
    area = N * H * W
    loss_vd = (jnp.sum(jnp.abs(onehot[:, 1] - softmax[:, 1]))
               + jnp.sum(jnp.abs(onehot[:, 2] - softmax[:, 2]))) / area
    eps = 1e-6
    c0, c1 = [], []
    for s in sizes:
        Ho, Wo = H // s, W // s
        pool = lambda x: x.reshape(N, Ho, s, Wo, s).mean(axis=(2, 4))
        for c, dst in ((0, c0), (1, c1)):
            sp = pool(onehot[:, c])
            st = pool(softmax[:, c])
            sp = sp * ((sp > 0) & (sp < s * s))
            st = st * ((st > 0) & (st < s * s))
            dst.append(jnp.sum(jnp.abs(sp - st))
                       / (jnp.sum((st > 0).astype(jnp.float32)) + eps))
    sizes_f = jnp.asarray(sizes, jnp.float32)
    artery = jnp.sqrt(N * jnp.sum(sizes_f * jnp.stack(c0) ** 2))
    vein = jnp.sqrt(N * jnp.sum(sizes_f * jnp.stack(c1) ** 2))
    size_t = jnp.sqrt(jnp.sum(sizes_f ** 2))
    loss_fd = (artery + vein) / size_t / N
    return beta * loss_ce + alpha * loss_fd + gamma * loss_vd


if __name__ == "__main__":
    key = jax.random.PRNGKey(0)
    beta, alpha, gamma = 1.0, 0.5, 0.25

    # ---- small-image path: 2 images per grid step, single band ----
    N, C, img_size = 2, 3, 16
    kp, kt = jax.random.split(key)
    pred = jax.random.normal(kp, (N, C, img_size, img_size), dtype=jnp.float32)
    true = jax.random.randint(kt, (N, img_size, img_size), 0, 3, dtype=jnp.int32)
    ref = cf_loss_ref(pred, true, img_size=img_size, beta=beta, alpha=alpha, gamma=gamma)

    loss = cf_loss(pred, true, img_size=img_size, beta=beta, alpha=alpha, gamma=gamma)
    loss = jax.block_until_ready(loss)
    assert jnp.isfinite(loss), loss
    assert jnp.allclose(loss, ref, rtol=5e-3, atol=5e-3), (loss, ref)

    # bandwidth-optimised storage path (bf16 logits in HBM, f32 compute in-kernel)
    loss_bf16 = cf_loss(pred, true, img_size=img_size, beta=beta, alpha=alpha,
                        gamma=gamma, pred_store_dtype=jnp.bfloat16)
    loss_bf16 = jax.block_until_ready(loss_bf16)
    assert jnp.isfinite(loss_bf16), loss_bf16
    assert jnp.allclose(loss_bf16, ref, rtol=2e-2, atol=2e-2), (loss_bf16, ref)

    # ---- row-band path (the accumulator structure used for large images) ----
    N2, img2 = 2, 64
    kp2, kt2 = jax.random.split(jax.random.PRNGKey(1))
    pred2 = jax.random.normal(kp2, (N2, C, img2, img2), dtype=jnp.float32)
    true2 = jax.random.randint(kt2, (N2, img2, img2), 0, 3, dtype=jnp.int32)
    ref2 = cf_loss_ref(pred2, true2, img_size=img2, beta=beta, alpha=alpha, gamma=gamma)
    loss2 = cf_loss(pred2, true2, img_size=img2, beta=beta, alpha=alpha, gamma=gamma,
                    band_rows=32)
    loss2 = jax.block_until_ready(loss2)
    assert jnp.isfinite(loss2), loss2
    assert jnp.allclose(loss2, ref2, rtol=5e-3, atol=5e-3), (loss2, ref2)

    print("KERNEL_OK")
</pallas_src>

<mosaic_0001>
module attributes {stable_mosaic.version = 11 : i64} {
  func.func @_cf_loss_kernel(%arg0: i32, %arg1: i32, %arg2: memref<2x3x16x16xf32, #tpu.memory_space<vmem>>, %arg3: memref<2x16x16xi8, #tpu.memory_space<vmem>>, %arg4: memref<4x16xbf16, #tpu.memory_space<vmem>>, %arg5: memref<64x16xbf16, #tpu.memory_space<vmem>>, %arg6: memref<3x4xf32, #tpu.memory_space<vmem>>, %arg7: memref<16x12xf32, #tpu.memory_space<vmem>>, %arg8: memref<1x8x128xf32, #tpu.memory_space<vmem>>, %arg9: memref<2x4x16xf32, #tpu.memory_space<vmem>>) attributes {dimension_semantics = [#tpu.dimension_semantics<parallel>, #tpu.dimension_semantics<arbitrary>], iteration_bounds = array<i64: 1, 1>, scalar_prefetch = 0 : i64, scratch_operands = 1 : i64, tpu.core_type = #tpu.core_type<tc>, window_params = [{transform_indices = @transform_0, window_bounds = array<i64: 2, 3, 16, 16>}, {transform_indices = @transform_1, window_bounds = array<i64: 2, 16, 16>}, {pipeline_mode = #tpu.pipeline_mode<synchronous>, transform_indices = @transform_2, window_bounds = array<i64: 4, 16>}, {pipeline_mode = #tpu.pipeline_mode<synchronous>, transform_indices = @transform_3, window_bounds = array<i64: 64, 16>}, {pipeline_mode = #tpu.pipeline_mode<synchronous>, transform_indices = @transform_4, window_bounds = array<i64: 3, 4>}, {pipeline_mode = #tpu.pipeline_mode<synchronous>, transform_indices = @transform_5, window_bounds = array<i64: 16, 12>}, {transform_indices = @transform_6, window_bounds = array<i64: 1, 8, 128>}]} {
    %c0_i32 = arith.constant 0 : i32
    %0 = arith.cmpi eq, %arg1, %c0_i32 : i32
    %1 = arith.extui %0 : i1 to i32
    %c0_i32_0 = arith.constant 0 : i32
    %2 = arith.cmpi ne, %1, %c0_i32_0 : i32
    scf.if %2 {
      %cst_31 = arith.constant 0.000000e+00 : f32
      %106 = vector.broadcast %cst_31 : f32 to vector<1x8x128xf32>
      %c0_32 = arith.constant 0 : index
      %c0_33 = arith.constant 0 : index
      %c0_34 = arith.constant 0 : index
      %107 = vector.load %arg8[%c0_32, %c0_33, %c0_34] : memref<1x8x128xf32, #tpu.memory_space<vmem>>, vector<1x8x128xf32>
      tpu.vector_store %arg8[%c0_32, %c0_33, %c0_34], %106 {strides = array<i32>} : memref<1x8x128xf32, #tpu.memory_space<vmem>>, vector<1x8x128xf32>,
    } else {
    }
    %c0 = arith.constant 0 : index
    %c0_1 = arith.constant 0 : index
    %c0_2 = arith.constant 0 : index
    %3 = vector.load %arg3[%c0, %c0_1, %c0_2] : memref<2x16x16xi8, #tpu.memory_space<vmem>>, vector<2x16x16xi8>
    %4 = arith.extsi %3 : vector<2x16x16xi8> to vector<2x16x16xi32>
    %c0_3 = arith.constant 0 : index
    %c0_4 = arith.constant 0 : index
    %c0_5 = arith.constant 0 : index
    %c0_6 = arith.constant 0 : index
    %5 = vector.load %arg2[%c0_3, %c0_4, %c0_5, %c0_6] : memref<2x3x16x16xf32, #tpu.memory_space<vmem>>, vector<2x3x16x16xf32>
    %6 = vector.extract_strided_slice %5 {offsets = [0, 0, 0, 0], sizes = [2, 1, 16, 16], strides = [1, 1, 1, 1]} : vector<2x3x16x16xf32> to vector<2x1x16x16xf32>
    %7 = vector.shape_cast %6 : vector<2x1x16x16xf32> to vector<2x16x16xf32>
    %8 = vector.extract_strided_slice %5 {offsets = [0, 1, 0, 0], sizes = [2, 1, 16, 16], strides = [1, 1, 1, 1]} : vector<2x3x16x16xf32> to vector<2x1x16x16xf32>
    %9 = vector.shape_cast %8 : vector<2x1x16x16xf32> to vector<2x16x16xf32>
    %10 = vector.extract_strided_slice %5 {offsets = [0, 2, 0, 0], sizes = [2, 1, 16, 16], strides = [1, 1, 1, 1]} : vector<2x3x16x16xf32> to vector<2x1x16x16xf32>
    %11 = vector.shape_cast %10 : vector<2x1x16x16xf32> to vector<2x16x16xf32>
    %12 = arith.maximumf %7, %9 : vector<2x16x16xf32>
    %13 = arith.maximumf %12, %11 : vector<2x16x16xf32>
    %14 = arith.subf %7, %13 : vector<2x16x16xf32>
    %15 = math.exp %14 : vector<2x16x16xf32>
    %16 = arith.subf %9, %13 : vector<2x16x16xf32>
    %17 = math.exp %16 : vector<2x16x16xf32>
    %18 = arith.subf %11, %13 : vector<2x16x16xf32>
    %19 = math.exp %18 : vector<2x16x16xf32>
    %20 = arith.addf %15, %17 : vector<2x16x16xf32>
    %21 = arith.addf %20, %19 : vector<2x16x16xf32>
    %22 = tpu.reciprocal %21 {approx = true} : vector<2x16x16xf32> -> vector<2x16x16xf32>
    %23 = arith.mulf %15, %22 : vector<2x16x16xf32>
    %24 = arith.mulf %17, %22 : vector<2x16x16xf32>
    %25 = arith.mulf %19, %22 : vector<2x16x16xf32>
    %c0_i32_7 = arith.constant 0 : i32
    %26 = vector.broadcast %c0_i32_7 : i32 to vector<2x16x16xi32>
    %27 = arith.cmpi eq, %4, %26 : vector<2x16x16xi32>
    %28 = arith.extui %27 : vector<2x16x16xi1> to vector<2x16x16xi32>
    %29 = arith.sitofp %28 : vector<2x16x16xi32> to vector<2x16x16xf32>
    %c1_i32 = arith.constant 1 : i32
    %30 = vector.broadcast %c1_i32 : i32 to vector<2x16x16xi32>
    %31 = arith.cmpi eq, %4, %30 : vector<2x16x16xi32>
    %32 = arith.extui %31 : vector<2x16x16xi1> to vector<2x16x16xi32>
    %33 = arith.sitofp %32 : vector<2x16x16xi32> to vector<2x16x16xf32>
    %c0_i32_8 = arith.constant 0 : i32
    %34 = vector.broadcast %c0_i32_8 : i32 to vector<2x16x16xi32>
    %35 = arith.cmpi eq, %4, %34 : vector<2x16x16xi32>
    %c1_i32_9 = arith.constant 1 : i32
    %36 = vector.broadcast %c1_i32_9 : i32 to vector<2x16x16xi32>
    %37 = arith.cmpi eq, %4, %36 : vector<2x16x16xi32>
    %38 = arith.select %37, %9, %11 : vector<2x16x16xi1>, vector<2x16x16xf32>
    %39 = arith.select %35, %7, %38 : vector<2x16x16xi1>, vector<2x16x16xf32>
    %40 = math.log %21 : vector<2x16x16xf32>
    %41 = arith.addf %13, %40 : vector<2x16x16xf32>
    %42 = arith.subf %41, %39 : vector<2x16x16xf32>
    %43 = vector.shape_cast %42 : vector<2x16x16xf32> to vector<1x2x16x16xf32>
    %cst = arith.constant dense<0.000000e+00> : vector<1xf32>
    %44 = vector.multi_reduction <add>, %43, %cst [1, 2, 3] : vector<1x2x16x16xf32> to vector<1xf32>
    %45 = vector.shape_cast %44 : vector<1xf32> to vector<1x1x1x1xf32>
    %46 = vector.extract %45[0, 0, 0, 0] : f32 from vector<1x1x1x1xf32>
    %47 = arith.subf %33, %24 : vector<2x16x16xf32>
    %48 = math.absf %47 : vector<2x16x16xf32>
    %c2_i32 = arith.constant 2 : i32
    %49 = vector.broadcast %c2_i32 : i32 to vector<2x16x16xi32>
    %50 = arith.cmpi eq, %4, %49 : vector<2x16x16xi32>
    %51 = arith.extui %50 : vector<2x16x16xi1> to vector<2x16x16xi32>
    %52 = arith.sitofp %51 : vector<2x16x16xi32> to vector<2x16x16xf32>
    %53 = arith.subf %52, %25 : vector<2x16x16xf32>
    %54 = math.absf %53 : vector<2x16x16xf32>
    %55 = arith.addf %48, %54 : vector<2x16x16xf32>
    %56 = vector.shape_cast %55 : vector<2x16x16xf32> to vector<1x2x16x16xf32>
    %cst_10 = arith.constant dense<0.000000e+00> : vector<1xf32>
    %57 = vector.multi_reduction <add>, %56, %cst_10 [1, 2, 3] : vector<1x2x16x16xf32> to vector<1xf32>
    %58 = vector.shape_cast %57 : vector<1xf32> to vector<1x1x1x1xf32>
    %59 = vector.extract %58[0, 0, 0, 0] : f32 from vector<1x1x1x1xf32>
    %60 = tpu.iota {dimensions = array<i32: 2>} : vector<1x8x128xi32>
    %c0_11 = arith.constant 0 : index
    %c0_12 = arith.constant 0 : index
    %c0_13 = arith.constant 0 : index
    %61 = vector.load %arg8[%c0_11, %c0_12, %c0_13] : memref<1x8x128xf32, #tpu.memory_space<vmem>>, vector<1x8x128xf32>
    %c0_i32_14 = arith.constant 0 : i32
    %62 = vector.broadcast %c0_i32_14 : i32 to vector<1x8x128xi32>
    %63 = arith.cmpi eq, %60, %62 : vector<1x8x128xi32>
    %cst_15 = arith.constant 0.000000e+00 : f32
    %64 = vector.broadcast %46 : f32 to vector<1x8x128xf32>
    %65 = vector.broadcast %cst_15 : f32 to vector<1x8x128xf32>
    %66 = arith.select %63, %64, %65 : vector<1x8x128xi1>, vector<1x8x128xf32>
    %c1_i32_16 = arith.constant 1 : i32
    %67 = vector.broadcast %c1_i32_16 : i32 to vector<1x8x128xi32>
    %68 = arith.cmpi eq, %60, %67 : vector<1x8x128xi32>
    %cst_17 = arith.constant 0.000000e+00 : f32
    %69 = vector.broadcast %59 : f32 to vector<1x8x128xf32>
    %70 = vector.broadcast %cst_17 : f32 to vector<1x8x128xf32>
    %71 = arith.select %68, %69, %70 : vector<1x8x128xi1>, vector<1x8x128xf32>
    %72 = arith.addf %66, %71 : vector<1x8x128xf32>
    %73 = arith.addf %61, %72 : vector<1x8x128xf32>
    %c0_18 = arith.constant 0 : index
    %c0_19 = arith.constant 0 : index
    %c0_20 = arith.constant 0 : index
    %74 = vector.load %arg8[%c0_18, %c0_19, %c0_20] : memref<1x8x128xf32, #tpu.memory_space<vmem>>, vector<1x8x128xf32>
    tpu.vector_store %arg8[%c0_18, %c0_19, %c0_20], %73 {strides = array<i32>} : memref<1x8x128xf32, #tpu.memory_space<vmem>>, vector<1x8x128xf32>,
    %c0_21 = arith.constant 0 : index
    %c0_22 = arith.constant 0 : index
    %75 = vector.load %arg4[%c0_21, %c0_22] : memref<4x16xbf16, #tpu.memory_space<vmem>>, vector<4x16xbf16>
    %c0_23 = arith.constant 0 : index
    %c0_24 = arith.constant 0 : index
    %76 = vector.load %arg5[%c0_23, %c0_24] : memref<64x16xbf16, #tpu.memory_space<vmem>>, vector<64x16xbf16>
    %77 = vector.extract_strided_slice %29 {offsets = [0, 0, 0], sizes = [1, 16, 16], strides = [1, 1, 1]} : vector<2x16x16xf32> to vector<1x16x16xf32>
    %78 = vector.shape_cast %77 : vector<1x16x16xf32> to vector<16x16xf32>
    %79 = vector.extract_strided_slice %33 {offsets = [0, 0, 0], sizes = [1, 16, 16], strides = [1, 1, 1]} : vector<2x16x16xf32> to vector<1x16x16xf32>
    %80 = vector.shape_cast %79 : vector<1x16x16xf32> to vector<16x16xf32>
    %81 = vector.extract_strided_slice %23 {offsets = [0, 0, 0], sizes = [1, 16, 16], strides = [1, 1, 1]} : vector<2x16x16xf32> to vector<1x16x16xf32>
    %82 = vector.shape_cast %81 : vector<1x16x16xf32> to vector<16x16xf32>
    %83 = vector.extract_strided_slice %24 {offsets = [0, 0, 0], sizes = [1, 16, 16], strides = [1, 1, 1]} : vector<2x16x16xf32> to vector<1x16x16xf32>
    %84 = vector.shape_cast %83 : vector<1x16x16xf32> to vector<16x16xf32>
    %85 = tpu.concatenate %78, %80, %82, %84 in 1 : vector<16x16xf32>, vector<16x16xf32>, vector<16x16xf32>, vector<16x16xf32> -> vector<16x64xf32>
    %86 = arith.truncf %85 : vector<16x64xf32> to vector<16x64xbf16>
    %cst_25 = arith.constant dense<0.000000e+00> : vector<4x64xf32>
    %87 = tpu.matmul %75, %86, %cst_25 {dimension_numbers = #tpu.dot_dimension_numbers<[1], [0], [0], [1], [0, 0, 1, 1], [], []>} : vector<4x16xbf16>, vector<16x64xbf16>, vector<4x64xf32> -> vector<4x64xf32>
    %88 = arith.truncf %87 : vector<4x64xf32> to vector<4x64xbf16>
    %cst_26 = arith.constant dense<0.000000e+00> : vector<4x16xf32>
    %89 = tpu.matmul %88, %76, %cst_26 {dimension_numbers = #tpu.dot_dimension_numbers<[1], [0], [0], [1], [0, 0, 1, 1], [], []>} : vector<4x64xbf16>, vector<64x16xbf16>, vector<4x16xf32> -> vector<4x16xf32>
    %90 = vector.extract_strided_slice %29 {offsets = [1, 0, 0], sizes = [1, 16, 16], strides = [1, 1, 1]} : vector<2x16x16xf32> to vector<1x16x16xf32>
    %91 = vector.shape_cast %90 : vector<1x16x16xf32> to vector<16x16xf32>
    %92 = vector.extract_strided_slice %33 {offsets = [1, 0, 0], sizes = [1, 16, 16], strides = [1, 1, 1]} : vector<2x16x16xf32> to vector<1x16x16xf32>
    %93 = vector.shape_cast %92 : vector<1x16x16xf32> to vector<16x16xf32>
    %94 = vector.extract_strided_slice %23 {offsets = [1, 0, 0], sizes = [1, 16, 16], strides = [1, 1, 1]} : vector<2x16x16xf32> to vector<1x16x16xf32>
    %95 = vector.shape_cast %94 : vector<1x16x16xf32> to vector<16x16xf32>
    %96 = vector.extract_strided_slice %24 {offsets = [1, 0, 0], sizes = [1, 16, 16], strides = [1, 1, 1]} : vector<2x16x16xf32> to vector<1x16x16xf32>
    %97 = vector.shape_cast %96 : vector<1x16x16xf32> to vector<16x16xf32>
    %98 = tpu.concatenate %91, %93, %95, %97 in 1 : vector<16x16xf32>, vector<16x16xf32>, vector<16x16xf32>, vector<16x16xf32> -> vector<16x64xf32>
    %99 = arith.truncf %98 : vector<16x64xf32> to vector<16x64xbf16>
    %cst_27 = arith.constant dense<0.000000e+00> : vector<4x64xf32>
    %100 = tpu.matmul %75, %99, %cst_27 {dimension_numbers = #tpu.dot_dimension_numbers<[1], [0], [0], [1], [0, 0, 1, 1], [], []>} : vector<4x16xbf16>, vector<16x64xbf16>, vector<4x64xf32> -> vector<4x64xf32>
    %101 = arith.truncf %100 : vector<4x64xf32> to vector<4x64xbf16>
    %cst_28 = arith.constant dense<0.000000e+00> : vector<4x16xf32>
    %102 = tpu.matmul %101, %76, %cst_28 {dimension_numbers = #tpu.dot_dimension_numbers<[1], [0], [0], [1], [0, 0, 1, 1], [], []>} : vector<4x64xbf16>, vector<64x16xbf16>, vector<4x16xf32> -> vector<4x16xf32>
    %c0_i32_29 = arith.constant 0 : i32
    %103 = arith.cmpi eq, %arg1, %c0_i32_29 : i32
    %104 = arith.extui %103 : i1 to i32
    %c0_i32_30 = arith.constant 0 : i32
    %105 = arith.cmpi ne, %104, %c0_i32_30 : i32
    scf.if %105 {
      %cst_31 = arith.constant 0.000000e+00 : f32
      %106 = vector.broadcast %cst_31 : f32 to vector<1x8x128xf32>
      %107 = vector.extract_strided_slice %89 {offsets = [0, 0], sizes = [4, 8], strides = [1, 1]} : vector<4x16xf32> to vector<4x8xf32>
      %108 = vector.extract_strided_slice %89 {offsets = [0, 8], sizes = [4, 8], strides = [1, 1]} : vector<4x16xf32> to vector<4x8xf32>
      %109 = arith.subf %107, %108 : vector<4x8xf32>
      %110 = math.absf %109 : vector<4x8xf32>
      %cst_32 = arith.constant 0.000000e+00 : f32
      %111 = vector.broadcast %cst_32 : f32 to vector<4x8xf32>
      %112 = arith.cmpf ogt, %108, %111 : vector<4x8xf32>
      %113 = arith.extui %112 : vector<4x8xi1> to vector<4x8xi32>
      %114 = arith.sitofp %113 : vector<4x8xi32> to vector<4x8xf32>
      %115 = tpu.iota {dimensions = array<i32: 1>} : vector<4x8xi32>
      %c0_i32_33 = arith.constant 0 : i32
      %116 = vector.broadcast %c0_i32_33 : i32 to vector<4x8xi32>
      %117 = arith.cmpi sge, %115, %116 : vector<4x8xi32>
      %c4_i32 = arith.constant 4 : i32
      %118 = vector.broadcast %c4_i32 : i32 to vector<4x8xi32>
      %119 = arith.cmpi slt, %115, %118 : vector<4x8xi32>
      %120 = arith.andi %117, %119 : vector<4x8xi1>
      %cst_34 = arith.constant 0.000000e+00 : f32
      %121 = vector.broadcast %cst_34 : f32 to vector<4x8xf32>
      %122 = arith.select %120, %110, %121 : vector<4x8xi1>, vector<4x8xf32>
      %123 = vector.shape_cast %122 : vector<4x8xf32> to vector<1x4x8xf32>
      %cst_35 = arith.constant dense<0.000000e+00> : vector<1xf32>
      %124 = vector.multi_reduction <add>, %123, %cst_35 [1, 2] : vector<1x4x8xf32> to vector<1xf32>
      %125 = vector.shape_cast %124 : vector<1xf32> to vector<1x1x1xf32>
      %126 = vector.extract %125[0, 0, 0] : f32 from vector<1x1x1xf32>
      %cst_36 = arith.constant 6.250000e-02 : f32
      %127 = arith.mulf %126, %cst_36 : f32
      %cst_37 = arith.constant 0.000000e+00 : f32
      %128 = vector.broadcast %cst_37 : f32 to vector<4x8xf32>
      %129 = arith.select %120, %114, %128 : vector<4x8xi1>, vector<4x8xf32>
      %130 = vector.shape_cast %129 : vector<4x8xf32> to vector<1x4x8xf32>
      %cst_38 = arith.constant dense<0.000000e+00> : vector<1xf32>
      %131 = vector.multi_reduction <add>, %130, %cst_38 [1, 2] : vector<1x4x8xf32> to vector<1xf32>
      %132 = vector.shape_cast %131 : vector<1xf32> to vector<1x1x1xf32>
      %133 = vector.extract %132[0, 0, 0] : f32 from vector<1x1x1xf32>
      %c4_i32_39 = arith.constant 4 : i32
      %134 = vector.broadcast %c4_i32_39 : i32 to vector<4x8xi32>
      %135 = arith.cmpi sge, %115, %134 : vector<4x8xi32>
      %c8_i32 = arith.constant 8 : i32
      %136 = vector.broadcast %c8_i32 : i32 to vector<4x8xi32>
      %137 = arith.cmpi slt, %115, %136 : vector<4x8xi32>
      %138 = arith.andi %135, %137 : vector<4x8xi1>
      %cst_40 = arith.constant 0.000000e+00 : f32
      %139 = vector.broadcast %cst_40 : f32 to vector<4x8xf32>
      %140 = arith.select %138, %110, %139 : vector<4x8xi1>, vector<4x8xf32>
      %141 = vector.shape_cast %140 : vector<4x8xf32> to vector<1x4x8xf32>
      %cst_41 = arith.constant dense<0.000000e+00> : vector<1xf32>
      %142 = vector.multi_reduction <add>, %141, %cst_41 [1, 2] : vector<1x4x8xf32> to vector<1xf32>
      %143 = vector.shape_cast %142 : vector<1xf32> to vector<1x1x1xf32>
      %144 = vector.extract %143[0, 0, 0] : f32 from vector<1x1x1xf32>
      %cst_42 = arith.constant 6.250000e-02 : f32
      %145 = arith.mulf %144, %cst_42 : f32
      %cst_43 = arith.constant 0.000000e+00 : f32
      %146 = vector.broadcast %cst_43 : f32 to vector<4x8xf32>
      %147 = arith.select %138, %114, %146 : vector<4x8xi1>, vector<4x8xf32>
      %148 = vector.shape_cast %147 : vector<4x8xf32> to vector<1x4x8xf32>
      %cst_44 = arith.constant dense<0.000000e+00> : vector<1xf32>
      %149 = vector.multi_reduction <add>, %148, %cst_44 [1, 2] : vector<1x4x8xf32> to vector<1xf32>
      %150 = vector.shape_cast %149 : vector<1xf32> to vector<1x1x1xf32>
      %151 = vector.extract %150[0, 0, 0] : f32 from vector<1x1x1xf32>
      %c0_45 = arith.constant 0 : index
      %c0_46 = arith.constant 0 : index
      %152 = vector.load %arg6[%c0_45, %c0_46] : memref<3x4xf32, #tpu.memory_space<vmem>>, vector<3x4xf32>
      %c0_47 = arith.constant 0 : index
      %c0_48 = arith.constant 0 : index
      %153 = vector.load %arg7[%c0_47, %c0_48] : memref<16x12xf32, #tpu.memory_space<vmem>>, vector<16x12xf32>
      %cst_49 = arith.constant dense<0.000000e+00> : vector<3x16xf32>
      %154 = tpu.matmul %152, %89, %cst_49 {dimension_numbers = #tpu.dot_dimension_numbers<[1], [0], [0], [1], [0, 0, 1, 1], [], []>} : vector<3x4xf32>, vector<4x16xf32>, vector<3x16xf32> -> vector<3x16xf32>
      %cst_50 = arith.constant dense<0.000000e+00> : vector<3x12xf32>
      %155 = tpu.matmul %154, %153, %cst_50 {dimension_numbers = #tpu.dot_dimension_numbers<[1], [0], [0], [1], [0, 0, 1, 1], [], []>} : vector<3x16xf32>, vector<16x12xf32>, vector<3x12xf32> -> vector<3x12xf32>
      %156 = vector.extract_strided_slice %155 {offsets = [0, 0], sizes = [3, 6], strides = [1, 1]} : vector<3x12xf32> to vector<3x6xf32>
      %157 = vector.extract_strided_slice %155 {offsets = [0, 6], sizes = [3, 6], strides = [1, 1]} : vector<3x12xf32> to vector<3x6xf32>
      %158 = arith.subf %156, %157 : vector<3x6xf32>
      %159 = math.absf %158 : vector<3x6xf32>
      %cst_51 = arith.constant 0.000000e+00 : f32
      %160 = vector.broadcast %cst_51 : f32 to vector<3x6xf32>
      %161 = arith.cmpf ogt, %157, %160 : vector<3x6xf32>
      %162 = arith.extui %161 : vector<3x6xi1> to vector<3x6xi32>
      %163 = arith.sitofp %162 : vector<3x6xi32> to vector<3x6xf32>
      %164 = tpu.iota {dimensions = array<i32: 0>} : vector<3x6xi32>
      %165 = tpu.iota {dimensions = array<i32: 1>} : vector<3x6xi32>
      %c0_i32_52 = arith.constant 0 : i32
      %166 = vector.broadcast %c0_i32_52 : i32 to vector<3x6xi32>
      %167 = arith.cmpi sge, %164, %166 : vector<3x6xi32>
      %c1_i32_53 = arith.constant 1 : i32
      %168 = vector.broadcast %c1_i32_53 : i32 to vector<3x6xi32>
      %169 = arith.cmpi slt, %164, %168 : vector<3x6xi32>
      %170 = arith.andi %167, %169 : vector<3x6xi1>
      %c0_i32_54 = arith.constant 0 : i32
      %171 = vector.broadcast %c0_i32_54 : i32 to vector<3x6xi32>
      %172 = arith.cmpi sge, %165, %171 : vector<3x6xi32>
      %173 = arith.andi %170, %172 : vector<3x6xi1>
      %c1_i32_55 = arith.constant 1 : i32
      %174 = vector.broadcast %c1_i32_55 : i32 to vector<3x6xi32>
      %175 = arith.cmpi slt, %165, %174 : vector<3x6xi32>
      %176 = arith.andi %173, %175 : vector<3x6xi1>
      %cst_56 = arith.constant 0.000000e+00 : f32
      %177 = vector.broadcast %cst_56 : f32 to vector<3x6xf32>
      %178 = arith.select %176, %159, %177 : vector<3x6xi1>, vector<3x6xf32>
      %179 = vector.shape_cast %178 : vector<3x6xf32> to vector<1x3x6xf32>
      %cst_57 = arith.constant dense<0.000000e+00> : vector<1xf32>
      %180 = vector.multi_reduction <add>, %179, %cst_57 [1, 2] : vector<1x3x6xf32> to vector<1xf32>
      %181 = vector.shape_cast %180 : vector<1xf32> to vector<1x1x1xf32>
      %182 = vector.extract %181[0, 0, 0] : f32 from vector<1x1x1xf32>
      %cst_58 = arith.constant 3.906250e-03 : f32
      %183 = arith.mulf %182, %cst_58 : f32
      %cst_59 = arith.constant 0.000000e+00 : f32
      %184 = vector.broadcast %cst_59 : f32 to vector<3x6xf32>
      %185 = arith.select %176, %163, %184 : vector<3x6xi1>, vector<3x6xf32>
      %186 = vector.shape_cast %185 : vector<3x6xf32> to vector<1x3x6xf32>
      %cst_60 = arith.constant dense<0.000000e+00> : vector<1xf32>
      %187 = vector.multi_reduction <add>, %186, %cst_60 [1, 2] : vector<1x3x6xf32> to vector<1xf32>
      %188 = vector.shape_cast %187 : vector<1xf32> to vector<1x1x1xf32>
      %189 = vector.extract %188[0, 0, 0] : f32 from vector<1x1x1xf32>
      %c0_i32_61 = arith.constant 0 : i32
      %190 = vector.broadcast %c0_i32_61 : i32 to vector<3x6xi32>
      %191 = arith.cmpi sge, %164, %190 : vector<3x6xi32>
      %c1_i32_62 = arith.constant 1 : i32
      %192 = vector.broadcast %c1_i32_62 : i32 to vector<3x6xi32>
      %193 = arith.cmpi slt, %164, %192 : vector<3x6xi32>
      %194 = arith.andi %191, %193 : vector<3x6xi1>
      %c3_i32 = arith.constant 3 : i32
      %195 = vector.broadcast %c3_i32 : i32 to vector<3x6xi32>
      %196 = arith.cmpi sge, %165, %195 : vector<3x6xi32>
      %197 = arith.andi %194, %196 : vector<3x6xi1>
      %c4_i32_63 = arith.constant 4 : i32
      %198 = vector.broadcast %c4_i32_63 : i32 to vector<3x6xi32>
      %199 = arith.cmpi slt, %165, %198 : vector<3x6xi32>
      %200 = arith.andi %197, %199 : vector<3x6xi1>
      %cst_64 = arith.constant 0.000000e+00 : f32
      %201 = vector.broadcast %cst_64 : f32 to vector<3x6xf32>
      %202 = arith.select %200, %159, %201 : vector<3x6xi1>, vector<3x6xf32>
      %203 = vector.shape_cast %202 : vector<3x6xf32> to vector<1x3x6xf32>
      %cst_65 = arith.constant dense<0.000000e+00> : vector<1xf32>
      %204 = vector.multi_reduction <add>, %203, %cst_65 [1, 2] : vector<1x3x6xf32> to vector<1xf32>
      %205 = vector.shape_cast %204 : vector<1xf32> to vector<1x1x1xf32>
      %206 = vector.extract %205[0, 0, 0] : f32 from vector<1x1x1xf32>
      %cst_66 = arith.constant 3.906250e-03 : f32
      %207 = arith.mulf %206, %cst_66 : f32
      %cst_67 = arith.constant 0.000000e+00 : f32
      %208 = vector.broadcast %cst_67 : f32 to vector<3x6xf32>
      %209 = arith.select %200, %163, %208 : vector<3x6xi1>, vector<3x6xf32>
      %210 = vector.shape_cast %209 : vector<3x6xf32> to vector<1x3x6xf32>
      %cst_68 = arith.constant dense<0.000000e+00> : vector<1xf32>
      %211 = vector.multi_reduction <add>, %210, %cst_68 [1, 2] : vector<1x3x6xf32> to vector<1xf32>
      %212 = vector.shape_cast %211 : vector<1xf32> to vector<1x1x1xf32>
      %213 = vector.extract %212[0, 0, 0] : f32 from vector<1x1x1xf32>
      %c1_i32_69 = arith.constant 1 : i32
      %214 = vector.broadcast %c1_i32_69 : i32 to vector<3x6xi32>
      %215 = arith.cmpi sge, %164, %214 : vector<3x6xi32>
      %c3_i32_70 = arith.constant 3 : i32
      %216 = vector.broadcast %c3_i32_70 : i32 to vector<3x6xi32>
      %217 = arith.cmpi slt, %164, %216 : vector<3x6xi32>
      %218 = arith.andi %215, %217 : vector<3x6xi1>
      %c1_i32_71 = arith.constant 1 : i32
      %219 = vector.broadcast %c1_i32_71 : i32 to vector<3x6xi32>
      %220 = arith.cmpi sge, %165, %219 : vector<3x6xi32>
      %221 = arith.andi %218, %220 : vector<3x6xi1>
      %c3_i32_72 = arith.constant 3 : i32
      %222 = vector.broadcast %c3_i32_72 : i32 to vector<3x6xi32>
      %223 = arith.cmpi slt, %165, %222 : vector<3x6xi32>
      %224 = arith.andi %221, %223 : vector<3x6xi1>
      %cst_73 = arith.constant 0.000000e+00 : f32
      %225 = vector.broadcast %cst_73 : f32 to vector<3x6xf32>
      %226 = arith.select %224, %159, %225 : vector<3x6xi1>, vector<3x6xf32>
      %227 = vector.shape_cast %226 : vector<3x6xf32> to vector<1x3x6xf32>
      %cst_74 = arith.constant dense<0.000000e+00> : vector<1xf32>
      %228 = vector.multi_reduction <add>, %227, %cst_74 [1, 2] : vector<1x3x6xf32> to vector<1xf32>
      %229 = vector.shape_cast %228 : vector<1xf32> to vector<1x1x1xf32>
      %230 = vector.extract %229[0, 0, 0] : f32 from vector<1x1x1xf32>
      %cst_75 = arith.constant 1.562500e-02 : f32
      %231 = arith.mulf %230, %cst_75 : f32
      %cst_76 = arith.constant 0.000000e+00 : f32
      %232 = vector.broadcast %cst_76 : f32 to vector<3x6xf32>
      %233 = arith.select %224, %163, %232 : vector<3x6xi1>, vector<3x6xf32>
      %234 = vector.shape_cast %233 : vector<3x6xf32> to vector<1x3x6xf32>
      %cst_77 = arith.constant dense<0.000000e+00> : vector<1xf32>
      %235 = vector.multi_reduction <add>, %234, %cst_77 [1, 2] : vector<1x3x6xf32> to vector<1xf32>
      %236 = vector.shape_cast %235 : vector<1xf32> to vector<1x1x1xf32>
      %237 = vector.extract %236[0, 0, 0] : f32 from vector<1x1x1xf32>
      %c1_i32_78 = arith.constant 1 : i32
      %238 = vector.broadcast %c1_i32_78 : i32 to vector<3x6xi32>
      %239 = arith.cmpi sge, %164, %238 : vector<3x6xi32>
      %c3_i32_79 = arith.constant 3 : i32
      %240 = vector.broadcast %c3_i32_79 : i32 to vector<3x6xi32>
      %241 = arith.cmpi slt, %164, %240 : vector<3x6xi32>
      %242 = arith.andi %239, %241 : vector<3x6xi1>
      %c4_i32_80 = arith.constant 4 : i32
      %243 = vector.broadcast %c4_i32_80 : i32 to vector<3x6xi32>
      %244 = arith.cmpi sge, %165, %243 : vector<3x6xi32>
      %245 = arith.andi %242, %244 : vector<3x6xi1>
      %c6_i32 = arith.constant 6 : i32
      %246 = vector.broadcast %c6_i32 : i32 to vector<3x6xi32>
      %247 = arith.cmpi slt, %165, %246 : vector<3x6xi32>
      %248 = arith.andi %245, %247 : vector<3x6xi1>
      %cst_81 = arith.constant 0.000000e+00 : f32
      %249 = vector.broadcast %cst_81 : f32 to vector<3x6xf32>
      %250 = arith.select %248, %159, %249 : vector<3x6xi1>, vector<3x6xf32>
      %251 = vector.shape_cast %250 : vector<3x6xf32> to vector<1x3x6xf32>
      %cst_82 = arith.constant dense<0.000000e+00> : vector<1xf32>
      %252 = vector.multi_reduction <add>, %251, %cst_82 [1, 2] : vector<1x3x6xf32> to vector<1xf32>
      %253 = vector.shape_cast %252 : vector<1xf32> to vector<1x1x1xf32>
      %254 = vector.extract %253[0, 0, 0] : f32 from vector<1x1x1xf32>
      %cst_83 = arith.constant 1.562500e-02 : f32
      %255 = arith.mulf %254, %cst_83 : f32
      %cst_84 = arith.constant 0.000000e+00 : f32
      %256 = vector.broadcast %cst_84 : f32 to vector<3x6xf32>
      %257 = arith.select %248, %163, %256 : vector<3x6xi1>, vector<3x6xf32>
      %258 = vector.shape_cast %257 : vector<3x6xf32> to vector<1x3x6xf32>
      %cst_85 = arith.constant dense<0.000000e+00> : vector<1xf32>
      %259 = vector.multi_reduction <add>, %258, %cst_85 [1, 2] : vector<1x3x6xf32> to vector<1xf32>
      %260 = vector.shape_cast %259 : vector<1xf32> to vector<1x1x1xf32>
      %261 = vector.extract %260[0, 0, 0] : f32 from vector<1x1x1xf32>
      %c10_i32 = arith.constant 10 : i32
      %262 = vector.broadcast %c10_i32 : i32 to vector<1x8x128xi32>
      %263 = arith.cmpi eq, %60, %262 : vector<1x8x128xi32>
      %cst_86 = arith.constant 0.000000e+00 : f32
      %264 = vector.broadcast %127 : f32 to vector<1x8x128xf32>
      %265 = vector.broadcast %cst_86 : f32 to vector<1x8x128xf32>
      %266 = arith.select %263, %264, %265 : vector<1x8x128xi1>, vector<1x8x128xf32>
      %267 = arith.addf %106, %266 : vector<1x8x128xf32>
      %c12_i32 = arith.constant 12 : i32
      %268 = vector.broadcast %c12_i32 : i32 to vector<1x8x128xi32>
      %269 = arith.cmpi eq, %60, %268 : vector<1x8x128xi32>
      %cst_87 = arith.constant 0.000000e+00 : f32
      %270 = vector.broadcast %133 : f32 to vector<1x8x128xf32>
      %271 = vector.broadcast %cst_87 : f32 to vector<1x8x128xf32>
      %272 = arith.select %269, %270, %271 : vector<1x8x128xi1>, vector<1x8x128xf32>
      %273 = arith.addf %267, %272 : vector<1x8x128xf32>
      %c11_i32 = arith.constant 11 : i32
      %274 = vector.broadcast %c11_i32 : i32 to vector<1x8x128xi32>
      %275 = arith.cmpi eq, %60, %274 : vector<1x8x128xi32>
      %cst_88 = arith.constant 0.000000e+00 : f32
      %276 = vector.broadcast %145 : f32 to vector<1x8x128xf32>
      %277 = vector.broadcast %cst_88 : f32 to vector<1x8x128xf32>
      %278 = arith.select %275, %276, %277 : vector<1x8x128xi1>, vector<1x8x128xf32>
      %279 = arith.addf %273, %278 : vector<1x8x128xf32>
      %c13_i32 = arith.constant 13 : i32
      %280 = vector.broadcast %c13_i32 : i32 to vector<1x8x128xi32>
      %281 = arith.cmpi eq, %60, %280 : vector<1x8x128xi32>
      %cst_89 = arith.constant 0.000000e+00 : f32
      %282 = vector.broadcast %151 : f32 to vector<1x8x128xf32>
      %283 = vector.broadcast %cst_89 : f32 to vector<1x8x128xf32>
      %284 = arith.select %281, %282, %283 : vector<1x8x128xi1>, vector<1x8x128xf32>
      %285 = arith.addf %279, %284 : vector<1x8x128xf32>
      %c2_i32_90 = arith.constant 2 : i32
      %286 = vector.broadcast %c2_i32_90 : i32 to vector<1x8x128xi32>
      %287 = arith.cmpi eq, %60, %286 : vector<1x8x128xi32>
      %cst_91 = arith.constant 0.000000e+00 : f32
      %288 = vector.broadcast %183 : f32 to vector<1x8x128xf32>
      %289 = vector.broadcast %cst_91 : f32 to vector<1x8x128xf32>
      %290 = arith.select %287, %288, %289 : vector<1x8x128xi1>, vector<1x8x128xf32>
      %291 = arith.addf %285, %290 : vector<1x8x128xf32>
      %c4_i32_92 = arith.constant 4 : i32
      %292 = vector.broadcast %c4_i32_92 : i32 to vector<1x8x128xi32>
      %293 = arith.cmpi eq, %60, %292 : vector<1x8x128xi32>
      %cst_93 = arith.constant 0.000000e+00 : f32
      %294 = vector.broadcast %189 : f32 to vector<1x8x128xf32>
      %295 = vector.broadcast %cst_93 : f32 to vector<1x8x128xf32>
      %296 = arith.select %293, %294, %295 : vector<1x8x128xi1>, vector<1x8x128xf32>
      %297 = arith.addf %291, %296 : vector<1x8x128xf32>
      %c3_i32_94 = arith.constant 3 : i32
      %298 = vector.broadcast %c3_i32_94 : i32 to vector<1x8x128xi32>
      %299 = arith.cmpi eq, %60, %298 : vector<1x8x128xi32>
      %cst_95 = arith.constant 0.000000e+00 : f32
      %300 = vector.broadcast %207 : f32 to vector<1x8x128xf32>
      %301 = vector.broadcast %cst_95 : f32 to vector<1x8x128xf32>
      %302 = arith.select %299, %300, %301 : vector<1x8x128xi1>, vector<1x8x128xf32>
      %303 = arith.addf %297, %302 : vector<1x8x128xf32>
      %c5_i32 = arith.constant 5 : i32
      %304 = vector.broadcast %c5_i32 : i32 to vector<1x8x128xi32>
      %305 = arith.cmpi eq, %60, %304 : vector<1x8x128xi32>
      %cst_96 = arith.constant 0.000000e+00 : f32
      %306 = vector.broadcast %213 : f32 to vector<1x8x128xf32>
      %307 = vector.broadcast %cst_96 : f32 to vector<1x8x128xf32>
      %308 = arith.select %305, %306, %307 : vector<1x8x128xi1>, vector<1x8x128xf32>
      %309 = arith.addf %303, %308 : vector<1x8x128xf32>
      %c6_i32_97 = arith.constant 6 : i32
      %310 = vector.broadcast %c6_i32_97 : i32 to vector<1x8x128xi32>
      %311 = arith.cmpi eq, %60, %310 : vector<1x8x128xi32>
      %cst_98 = arith.constant 0.000000e+00 : f32
      %312 = vector.broadcast %231 : f32 to vector<1x8x128xf32>
      %313 = vector.broadcast %cst_98 : f32 to vector<1x8x128xf32>
      %314 = arith.select %311, %312, %313 : vector<1x8x128xi1>, vector<1x8x128xf32>
      %315 = arith.addf %309, %314 : vector<1x8x128xf32>
      %c8_i32_99 = arith.constant 8 : i32
      %316 = vector.broadcast %c8_i32_99 : i32 to vector<1x8x128xi32>
      %317 = arith.cmpi eq, %60, %316 : vector<1x8x128xi32>
      %cst_100 = arith.constant 0.000000e+00 : f32
      %318 = vector.broadcast %237 : f32 to vector<1x8x128xf32>
      %319 = vector.broadcast %cst_100 : f32 to vector<1x8x128xf32>
      %320 = arith.select %317, %318, %319 : vector<1x8x128xi1>, vector<1x8x128xf32>
      %321 = arith.addf %315, %320 : vector<1x8x128xf32>
      %c7_i32 = arith.constant 7 : i32
      %322 = vector.broadcast %c7_i32 : i32 to vector<1x8x128xi32>
      %323 = arith.cmpi eq, %60, %322 : vector<1x8x128xi32>
      %cst_101 = arith.constant 0.000000e+00 : f32
      %324 = vector.broadcast %255 : f32 to vector<1x8x128xf32>
      %325 = vector.broadcast %cst_101 : f32 to vector<1x8x128xf32>
      %326 = arith.select %323, %324, %325 : vector<1x8x128xi1>, vector<1x8x128xf32>
      %327 = arith.addf %321, %326 : vector<1x8x128xf32>
      %c9_i32 = arith.constant 9 : i32
      %328 = vector.broadcast %c9_i32 : i32 to vector<1x8x128xi32>
      %329 = arith.cmpi eq, %60, %328 : vector<1x8x128xi32>
      %cst_102 = arith.constant 0.000000e+00 : f32
      %330 = vector.broadcast %261 : f32 to vector<1x8x128xf32>
      %331 = vector.broadcast %cst_102 : f32 to vector<1x8x128xf32>
      %332 = arith.select %329, %330, %331 : vector<1x8x128xi1>, vector<1x8x128xf32>
      %333 = arith.addf %327, %332 : vector<1x8x128xf32>
      %334 = vector.extract_strided_slice %102 {offsets = [0, 0], sizes = [4, 8], strides = [1, 1]} : vector<4x16xf32> to vector<4x8xf32>
      %335 = vector.extract_strided_slice %102 {offsets = [0, 8], sizes = [4, 8], strides = [1, 1]} : vector<4x16xf32> to vector<4x8xf32>
      %336 = arith.subf %334, %335 : vector<4x8xf32>
      %337 = math.absf %336 : vector<4x8xf32>
      %cst_103 = arith.constant 0.000000e+00 : f32
      %338 = vector.broadcast %cst_103 : f32 to vector<4x8xf32>
      %339 = arith.cmpf ogt, %335, %338 : vector<4x8xf32>
      %340 = arith.extui %339 : vector<4x8xi1> to vector<4x8xi32>
      %341 = arith.sitofp %340 : vector<4x8xi32> to vector<4x8xf32>
      %342 = tpu.iota {dimensions = array<i32: 1>} : vector<4x8xi32>
      %c0_i32_104 = arith.constant 0 : i32
      %343 = vector.broadcast %c0_i32_104 : i32 to vector<4x8xi32>
      %344 = arith.cmpi sge, %342, %343 : vector<4x8xi32>
      %c4_i32_105 = arith.constant 4 : i32
      %345 = vector.broadcast %c4_i32_105 : i32 to vector<4x8xi32>
      %346 = arith.cmpi slt, %342, %345 : vector<4x8xi32>
      %347 = arith.andi %344, %346 : vector<4x8xi1>
      %cst_106 = arith.constant 0.000000e+00 : f32
      %348 = vector.broadcast %cst_106 : f32 to vector<4x8xf32>
      %349 = arith.select %347, %337, %348 : vector<4x8xi1>, vector<4x8xf32>
      %350 = vector.shape_cast %349 : vector<4x8xf32> to vector<1x4x8xf32>
      %cst_107 = arith.constant dense<0.000000e+00> : vector<1xf32>
      %351 = vector.multi_reduction <add>, %350, %cst_107 [1, 2] : vector<1x4x8xf32> to vector<1xf32>
      %352 = vector.shape_cast %351 : vector<1xf32> to vector<1x1x1xf32>
      %353 = vector.extract %352[0, 0, 0] : f32 from vector<1x1x1xf32>
      %cst_108 = arith.constant 6.250000e-02 : f32
      %354 = arith.mulf %353, %cst_108 : f32
      %cst_109 = arith.constant 0.000000e+00 : f32
      %355 = vector.broadcast %cst_109 : f32 to vector<4x8xf32>
      %356 = arith.select %347, %341, %355 : vector<4x8xi1>, vector<4x8xf32>
      %357 = vector.shape_cast %356 : vector<4x8xf32> to vector<1x4x8xf32>
      %cst_110 = arith.constant dense<0.000000e+00> : vector<1xf32>
      %358 = vector.multi_reduction <add>, %357, %cst_110 [1, 2] : vector<1x4x8xf32> to vector<1xf32>
      %359 = vector.shape_cast %358 : vector<1xf32> to vector<1x1x1xf32>
      %360 = vector.extract %359[0, 0, 0] : f32 from vector<1x1x1xf32>
      %c4_i32_111 = arith.constant 4 : i32
      %361 = vector.broadcast %c4_i32_111 : i32 to vector<4x8xi32>
      %362 = arith.cmpi sge, %342, %361 : vector<4x8xi32>
      %c8_i32_112 = arith.constant 8 : i32
      %363 = vector.broadcast %c8_i32_112 : i32 to vector<4x8xi32>
      %364 = arith.cmpi slt, %342, %363 : vector<4x8xi32>
      %365 = arith.andi %362, %364 : vector<4x8xi1>
      %cst_113 = arith.constant 0.000000e+00 : f32
      %366 = vector.broadcast %cst_113 : f32 to vector<4x8xf32>
      %367 = arith.select %365, %337, %366 : vector<4x8xi1>, vector<4x8xf32>
      %368 = vector.shape_cast %367 : vector<4x8xf32> to vector<1x4x8xf32>
      %cst_114 = arith.constant dense<0.000000e+00> : vector<1xf32>
      %369 = vector.multi_reduction <add>, %368, %cst_114 [1, 2] : vector<1x4x8xf32> to vector<1xf32>
      %370 = vector.shape_cast %369 : vector<1xf32> to vector<1x1x1xf32>
      %371 = vector.extract %370[0, 0, 0] : f32 from vector<1x1x1xf32>
      %cst_115 = arith.constant 6.250000e-02 : f32
      %372 = arith.mulf %371, %cst_115 : f32
      %cst_116 = arith.constant 0.000000e+00 : f32
      %373 = vector.broadcast %cst_116 : f32 to vector<4x8xf32>
      %374 = arith.select %365, %341, %373 : vector<4x8xi1>, vector<4x8xf32>
      %375 = vector.shape_cast %374 : vector<4x8xf32> to vector<1x4x8xf32>
      %cst_117 = arith.constant dense<0.000000e+00> : vector<1xf32>
      %376 = vector.multi_reduction <add>, %375, %cst_117 [1, 2] : vector<1x4x8xf32> to vector<1xf32>
      %377 = vector.shape_cast %376 : vector<1xf32> to vector<1x1x1xf32>
      %378 = vector.extract %377[0, 0, 0] : f32 from vector<1x1x1xf32>
      %c0_118 = arith.constant 0 : index
      %c0_119 = arith.constant 0 : index
      %379 = vector.load %arg6[%c0_118, %c0_119] : memref<3x4xf32, #tpu.memory_space<vmem>>, vector<3x4xf32>
      %c0_120 = arith.constant 0 : index
      %c0_121 = arith.constant 0 : index
      %380 = vector.load %arg7[%c0_120, %c0_121] : memref<16x12xf32, #tpu.memory_space<vmem>>, vector<16x12xf32>
      %cst_122 = arith.constant dense<0.000000e+00> : vector<3x16xf32>
      %381 = tpu.matmul %379, %102, %cst_122 {dimension_numbers = #tpu.dot_dimension_numbers<[1], [0], [0], [1], [0, 0, 1, 1], [], []>} : vector<3x4xf32>, vector<4x16xf32>, vector<3x16xf32> -> vector<3x16xf32>
      %cst_123 = arith.constant dense<0.000000e+00> : vector<3x12xf32>
      %382 = tpu.matmul %381, %380, %cst_123 {dimension_numbers = #tpu.dot_dimension_numbers<[1], [0], [0], [1], [0, 0, 1, 1], [], []>} : vector<3x16xf32>, vector<16x12xf32>, vector<3x12xf32> -> vector<3x12xf32>
      %383 = vector.extract_strided_slice %382 {offsets = [0, 0], sizes = [3, 6], strides = [1, 1]} : vector<3x12xf32> to vector<3x6xf32>
      %384 = vector.extract_strided_slice %382 {offsets = [0, 6], sizes = [3, 6], strides = [1, 1]} : vector<3x12xf32> to vector<3x6xf32>
      %385 = arith.subf %383, %384 : vector<3x6xf32>
      %386 = math.absf %385 : vector<3x6xf32>
      %cst_124 = arith.constant 0.000000e+00 : f32
      %387 = vector.broadcast %cst_124 : f32 to vector<3x6xf32>
      %388 = arith.cmpf ogt, %384, %387 : vector<3x6xf32>
      %389 = arith.extui %388 : vector<3x6xi1> to vector<3x6xi32>
      %390 = arith.sitofp %389 : vector<3x6xi32> to vector<3x6xf32>
      %391 = tpu.iota {dimensions = array<i32: 0>} : vector<3x6xi32>
      %392 = tpu.iota {dimensions = array<i32: 1>} : vector<3x6xi32>
      %c0_i32_125 = arith.constant 0 : i32
      %393 = vector.broadcast %c0_i32_125 : i32 to vector<3x6xi32>
      %394 = arith.cmpi sge, %391, %393 : vector<3x6xi32>
      %c1_i32_126 = arith.constant 1 : i32
      %395 = vector.broadcast %c1_i32_126 : i32 to vector<3x6xi32>
      %396 = arith.cmpi slt, %391, %395 : vector<3x6xi32>
      %397 = arith.andi %394, %396 : vector<3x6xi1>
      %c0_i32_127 = arith.constant 0 : i32
      %398 = vector.broadcast %c0_i32_127 : i32 to vector<3x6xi32>
      %399 = arith.cmpi sge, %392, %398 : vector<3x6xi32>
      %400 = arith.andi %397, %399 : vector<3x6xi1>
      %c1_i32_128 = arith.constant 1 : i32
      %401 = vector.broadcast %c1_i32_128 : i32 to vector<3x6xi32>
      %402 = arith.cmpi slt, %392, %401 : vector<3x6xi32>
      %403 = arith.andi %400, %402 : vector<3x6xi1>
      %cst_129 = arith.constant 0.000000e+00 : f32
      %404 = vector.broadcast %cst_129 : f32 to vector<3x6xf32>
      %405 = arith.select %403, %386, %404 : vector<3x6xi1>, vector<3x6xf32>
      %406 = vector.shape_cast %405 : vector<3x6xf32> to vector<1x3x6xf32>
      %cst_130 = arith.constant dense<0.000000e+00> : vector<1xf32>
      %407 = vector.multi_reduction <add>, %406, %cst_130 [1, 2] : vector<1x3x6xf32> to vector<1xf32>
      %408 = vector.shape_cast %407 : vector<1xf32> to vector<1x1x1xf32>
      %409 = vector.extract %408[0, 0, 0] : f32 from vector<1x1x1xf32>
      %cst_131 = arith.constant 3.906250e-03 : f32
      %410 = arith.mulf %409, %cst_131 : f32
      %cst_132 = arith.constant 0.000000e+00 : f32
      %411 = vector.broadcast %cst_132 : f32 to vector<3x6xf32>
      %412 = arith.select %403, %390, %411 : vector<3x6xi1>, vector<3x6xf32>
      %413 = vector.shape_cast %412 : vector<3x6xf32> to vector<1x3x6xf32>
      %cst_133 = arith.constant dense<0.000000e+00> : vector<1xf32>
      %414 = vector.multi_reduction <add>, %413, %cst_133 [1, 2] : vector<1x3x6xf32> to vector<1xf32>
      %415 = vector.shape_cast %414 : vector<1xf32> to vector<1x1x1xf32>
      %416 = vector.extract %415[0, 0, 0] : f32 from vector<1x1x1xf32>
      %c0_i32_134 = arith.constant 0 : i32
      %417 = vector.broadcast %c0_i32_134 : i32 to vector<3x6xi32>
      %418 = arith.cmpi sge, %391, %417 : vector<3x6xi32>
      %c1_i32_135 = arith.constant 1 : i32
      %419 = vector.broadcast %c1_i32_135 : i32 to vector<3x6xi32>
      %420 = arith.cmpi slt, %391, %419 : vector<3x6xi32>
      %421 = arith.andi %418, %420 : vector<3x6xi1>
      %c3_i32_136 = arith.constant 3 : i32
      %422 = vector.broadcast %c3_i32_136 : i32 to vector<3x6xi32>
      %423 = arith.cmpi sge, %392, %422 : vector<3x6xi32>
      %424 = arith.andi %421, %423 : vector<3x6xi1>
      %c4_i32_137 = arith.constant 4 : i32
      %425 = vector.broadcast %c4_i32_137 : i32 to vector<3x6xi32>
      %426 = arith.cmpi slt, %392, %425 : vector<3x6xi32>
      %427 = arith.andi %424, %426 : vector<3x6xi1>
      %cst_138 = arith.constant 0.000000e+00 : f32
      %428 = vector.broadcast %cst_138 : f32 to vector<3x6xf32>
      %429 = arith.select %427, %386, %428 : vector<3x6xi1>, vector<3x6xf32>
      %430 = vector.shape_cast %429 : vector<3x6xf32> to vector<1x3x6xf32>
      %cst_139 = arith.constant dense<0.000000e+00> : vector<1xf32>
      %431 = vector.multi_reduction <add>, %430, %cst_139 [1, 2] : vector<1x3x6xf32> to vector<1xf32>
      %432 = vector.shape_cast %431 : vector<1xf32> to vector<1x1x1xf32>
      %433 = vector.extract %432[0, 0, 0] : f32 from vector<1x1x1xf32>
      %cst_140 = arith.constant 3.906250e-03 : f32
      %434 = arith.mulf %433, %cst_140 : f32
      %cst_141 = arith.constant 0.000000e+00 : f32
      %435 = vector.broadcast %cst_141 : f32 to vector<3x6xf32>
      %436 = arith.select %427, %390, %435 : vector<3x6xi1>, vector<3x6xf32>
      %437 = vector.shape_cast %436 : vector<3x6xf32> to vector<1x3x6xf32>
      %cst_142 = arith.constant dense<0.000000e+00> : vector<1xf32>
      %438 = vector.multi_reduction <add>, %437, %cst_142 [1, 2] : vector<1x3x6xf32> to vector<1xf32>
      %439 = vector.shape_cast %438 : vector<1xf32> to vector<1x1x1xf32>
      %440 = vector.extract %439[0, 0, 0] : f32 from vector<1x1x1xf32>
      %c1_i32_143 = arith.constant 1 : i32
      %441 = vector.broadcast %c1_i32_143 : i32 to vector<3x6xi32>
      %442 = arith.cmpi sge, %391, %441 : vector<3x6xi32>
      %c3_i32_144 = arith.constant 3 : i32
      %443 = vector.broadcast %c3_i32_144 : i32 to vector<3x6xi32>
      %444 = arith.cmpi slt, %391, %443 : vector<3x6xi32>
      %445 = arith.andi %442, %444 : vector<3x6xi1>
      %c1_i32_145 = arith.constant 1 : i32
      %446 = vector.broadcast %c1_i32_145 : i32 to vector<3x6xi32>
      %447 = arith.cmpi sge, %392, %446 : vector<3x6xi32>
      %448 = arith.andi %445, %447 : vector<3x6xi1>
      %c3_i32_146 = arith.constant 3 : i32
      %449 = vector.broadcast %c3_i32_146 : i32 to vector<3x6xi32>
      %450 = arith.cmpi slt, %392, %449 : vector<3x6xi32>
      %451 = arith.andi %448, %450 : vector<3x6xi1>
      %cst_147 = arith.constant 0.000000e+00 : f32
      %452 = vector.broadcast %cst_147 : f32 to vector<3x6xf32>
      %453 = arith.select %451, %386, %452 : vector<3x6xi1>, vector<3x6xf32>
      %454 = vector.shape_cast %453 : vector<3x6xf32> to vector<1x3x6xf32>
      %cst_148 = arith.constant dense<0.000000e+00> : vector<1xf32>
      %455 = vector.multi_reduction <add>, %454, %cst_148 [1, 2] : vector<1x3x6xf32> to vector<1xf32>
      %456 = vector.shape_cast %455 : vector<1xf32> to vector<1x1x1xf32>
      %457 = vector.extract %456[0, 0, 0] : f32 from vector<1x1x1xf32>
      %cst_149 = arith.constant 1.562500e-02 : f32
      %458 = arith.mulf %457, %cst_149 : f32
      %cst_150 = arith.constant 0.000000e+00 : f32
      %459 = vector.broadcast %cst_150 : f32 to vector<3x6xf32>
      %460 = arith.select %451, %390, %459 : vector<3x6xi1>, vector<3x6xf32>
      %461 = vector.shape_cast %460 : vector<3x6xf32> to vector<1x3x6xf32>
      %cst_151 = arith.constant dense<0.000000e+00> : vector<1xf32>
      %462 = vector.multi_reduction <add>, %461, %cst_151 [1, 2] : vector<1x3x6xf32> to vector<1xf32>
      %463 = vector.shape_cast %462 : vector<1xf32> to vector<1x1x1xf32>
      %464 = vector.extract %463[0, 0, 0] : f32 from vector<1x1x1xf32>
      %c1_i32_152 = arith.constant 1 : i32
      %465 = vector.broadcast %c1_i32_152 : i32 to vector<3x6xi32>
      %466 = arith.cmpi sge, %391, %465 : vector<3x6xi32>
      %c3_i32_153 = arith.constant 3 : i32
      %467 = vector.broadcast %c3_i32_153 : i32 to vector<3x6xi32>
      %468 = arith.cmpi slt, %391, %467 : vector<3x6xi32>
      %469 = arith.andi %466, %468 : vector<3x6xi1>
      %c4_i32_154 = arith.constant 4 : i32
      %470 = vector.broadcast %c4_i32_154 : i32 to vector<3x6xi32>
      %471 = arith.cmpi sge, %392, %470 : vector<3x6xi32>
      %472 = arith.andi %469, %471 : vector<3x6xi1>
      %c6_i32_155 = arith.constant 6 : i32
      %473 = vector.broadcast %c6_i32_155 : i32 to vector<3x6xi32>
      %474 = arith.cmpi slt, %392, %473 : vector<3x6xi32>
      %475 = arith.andi %472, %474 : vector<3x6xi1>
      %cst_156 = arith.constant 0.000000e+00 : f32
      %476 = vector.broadcast %cst_156 : f32 to vector<3x6xf32>
      %477 = arith.select %475, %386, %476 : vector<3x6xi1>, vector<3x6xf32>
      %478 = vector.shape_cast %477 : vector<3x6xf32> to vector<1x3x6xf32>
      %cst_157 = arith.constant dense<0.000000e+00> : vector<1xf32>
      %479 = vector.multi_reduction <add>, %478, %cst_157 [1, 2] : vector<1x3x6xf32> to vector<1xf32>
      %480 = vector.shape_cast %479 : vector<1xf32> to vector<1x1x1xf32>
      %481 = vector.extract %480[0, 0, 0] : f32 from vector<1x1x1xf32>
      %cst_158 = arith.constant 1.562500e-02 : f32
      %482 = arith.mulf %481, %cst_158 : f32
      %cst_159 = arith.constant 0.000000e+00 : f32
      %483 = vector.broadcast %cst_159 : f32 to vector<3x6xf32>
      %484 = arith.select %475, %390, %483 : vector<3x6xi1>, vector<3x6xf32>
      %485 = vector.shape_cast %484 : vector<3x6xf32> to vector<1x3x6xf32>
      %cst_160 = arith.constant dense<0.000000e+00> : vector<1xf32>
      %486 = vector.multi_reduction <add>, %485, %cst_160 [1, 2] : vector<1x3x6xf32> to vector<1xf32>
      %487 = vector.shape_cast %486 : vector<1xf32> to vector<1x1x1xf32>
      %488 = vector.extract %487[0, 0, 0] : f32 from vector<1x1x1xf32>
      %c10_i32_161 = arith.constant 10 : i32
      %489 = vector.broadcast %c10_i32_161 : i32 to vector<1x8x128xi32>
      %490 = arith.cmpi eq, %60, %489 : vector<1x8x128xi32>
      %cst_162 = arith.constant 0.000000e+00 : f32
      %491 = vector.broadcast %354 : f32 to vector<1x8x128xf32>
      %492 = vector.broadcast %cst_162 : f32 to vector<1x8x128xf32>
      %493 = arith.select %490, %491, %492 : vector<1x8x128xi1>, vector<1x8x128xf32>
      %494 = arith.addf %333, %493 : vector<1x8x128xf32>
      %c12_i32_163 = arith.constant 12 : i32
      %495 = vector.broadcast %c12_i32_163 : i32 to vector<1x8x128xi32>
      %496 = arith.cmpi eq, %60, %495 : vector<1x8x128xi32>
      %cst_164 = arith.constant 0.000000e+00 : f32
      %497 = vector.broadcast %360 : f32 to vector<1x8x128xf32>
      %498 = vector.broadcast %cst_164 : f32 to vector<1x8x128xf32>
      %499 = arith.select %496, %497, %498 : vector<1x8x128xi1>, vector<1x8x128xf32>
      %500 = arith.addf %494, %499 : vector<1x8x128xf32>
      %c11_i32_165 = arith.constant 11 : i32
      %501 = vector.broadcast %c11_i32_165 : i32 to vector<1x8x128xi32>
      %502 = arith.cmpi eq, %60, %501 : vector<1x8x128xi32>
      %cst_166 = arith.constant 0.000000e+00 : f32
      %503 = vector.broadcast %372 : f32 to vector<1x8x128xf32>
      %504 = vector.broadcast %cst_166 : f32 to vector<1x8x128xf32>
      %505 = arith.select %502, %503, %504 : vector<1x8x128xi1>, vector<1x8x128xf32>
      %506 = arith.addf %500, %505 : vector<1x8x128xf32>
      %c13_i32_167 = arith.constant 13 : i32
      %507 = vector.broadcast %c13_i32_167 : i32 to vector<1x8x128xi32>
      %508 = arith.cmpi eq, %60, %507 : vector<1x8x128xi32>
      %cst_168 = arith.constant 0.000000e+00 : f32
      %509 = vector.broadcast %378 : f32 to vector<1x8x128xf32>
      %510 = vector.broadcast %cst_168 : f32 to vector<1x8x128xf32>
      %511 = arith.select %508, %509, %510 : vector<1x8x128xi1>, vector<1x8x128xf32>
      %512 = arith.addf %506, %511 : vector<1x8x128xf32>
      %c2_i32_169 = arith.constant 2 : i32
      %513 = vector.broadcast %c2_i32_169 : i32 to vector<1x8x128xi32>
      %514 = arith.cmpi eq, %60, %513 : vector<1x8x128xi32>
      %cst_170 = arith.constant 0.000000e+00 : f32
      %515 = vector.broadcast %410 : f32 to vector<1x8x128xf32>
      %516 = vector.broadcast %cst_170 : f32 to vector<1x8x128xf32>
      %517 = arith.select %514, %515, %516 : vector<1x8x128xi1>, vector<1x8x128xf32>
      %518 = arith.addf %512, %517 : vector<1x8x128xf32>
      %c4_i32_171 = arith.constant 4 : i32
      %519 = vector.broadcast %c4_i32_171 : i32 to vector<1x8x128xi32>
      %520 = arith.cmpi eq, %60, %519 : vector<1x8x128xi32>
      %cst_172 = arith.constant 0.000000e+00 : f32
      %521 = vector.broadcast %416 : f32 to vector<1x8x128xf32>
      %522 = vector.broadcast %cst_172 : f32 to vector<1x8x128xf32>
      %523 = arith.select %520, %521, %522 : vector<1x8x128xi1>, vector<1x8x128xf32>
      %524 = arith.addf %518, %523 : vector<1x8x128xf32>
      %c3_i32_173 = arith.constant 3 : i32
      %525 = vector.broadcast %c3_i32_173 : i32 to vector<1x8x128xi32>
      %526 = arith.cmpi eq, %60, %525 : vector<1x8x128xi32>
      %cst_174 = arith.constant 0.000000e+00 : f32
      %527 = vector.broadcast %434 : f32 to vector<1x8x128xf32>
      %528 = vector.broadcast %cst_174 : f32 to vector<1x8x128xf32>
      %529 = arith.select %526, %527, %528 : vector<1x8x128xi1>, vector<1x8x128xf32>
      %530 = arith.addf %524, %529 : vector<1x8x128xf32>
      %c5_i32_175 = arith.constant 5 : i32
      %531 = vector.broadcast %c5_i32_175 : i32 to vector<1x8x128xi32>
      %532 = arith.cmpi eq, %60, %531 : vector<1x8x128xi32>
      %cst_176 = arith.constant 0.000000e+00 : f32
      %533 = vector.broadcast %440 : f32 to vector<1x8x128xf32>
      %534 = vector.broadcast %cst_176 : f32 to vector<1x8x128xf32>
      %535 = arith.select %532, %533, %534 : vector<1x8x128xi1>, vector<1x8x128xf32>
      %536 = arith.addf %530, %535 : vector<1x8x128xf32>
      %c6_i32_177 = arith.constant 6 : i32
      %537 = vector.broadcast %c6_i32_177 : i32 to vector<1x8x128xi32>
      %538 = arith.cmpi eq, %60, %537 : vector<1x8x128xi32>
      %cst_178 = arith.constant 0.000000e+00 : f32
      %539 = vector.broadcast %458 : f32 to vector<1x8x128xf32>
      %540 = vector.broadcast %cst_178 : f32 to vector<1x8x128xf32>
      %541 = arith.select %538, %539, %540 : vector<1x8x128xi1>, vector<1x8x128xf32>
      %542 = arith.addf %536, %541 : vector<1x8x128xf32>
      %c8_i32_179 = arith.constant 8 : i32
      %543 = vector.broadcast %c8_i32_179 : i32 to vector<1x8x128xi32>
      %544 = arith.cmpi eq, %60, %543 : vector<1x8x128xi32>
      %cst_180 = arith.constant 0.000000e+00 : f32
      %545 = vector.broadcast %464 : f32 to vector<1x8x128xf32>
      %546 = vector.broadcast %cst_180 : f32 to vector<1x8x128xf32>
      %547 = arith.select %544, %545, %546 : vector<1x8x128xi1>, vector<1x8x128xf32>
      %548 = arith.addf %542, %547 : vector<1x8x128xf32>
      %c7_i32_181 = arith.constant 7 : i32
      %549 = vector.broadcast %c7_i32_181 : i32 to vector<1x8x128xi32>
      %550 = arith.cmpi eq, %60, %549 : vector<1x8x128xi32>
      %cst_182 = arith.constant 0.000000e+00 : f32
      %551 = vector.broadcast %482 : f32 to vector<1x8x128xf32>
      %552 = vector.broadcast %cst_182 : f32 to vector<1x8x128xf32>
      %553 = arith.select %550, %551, %552 : vector<1x8x128xi1>, vector<1x8x128xf32>
      %554 = arith.addf %548, %553 : vector<1x8x128xf32>
      %c9_i32_183 = arith.constant 9 : i32
      %555 = vector.broadcast %c9_i32_183 : i32 to vector<1x8x128xi32>
      %556 = arith.cmpi eq, %60, %555 : vector<1x8x128xi32>
      %cst_184 = arith.constant 0.000000e+00 : f32
      %557 = vector.broadcast %488 : f32 to vector<1x8x128xf32>
      %558 = vector.broadcast %cst_184 : f32 to vector<1x8x128xf32>
      %559 = arith.select %556, %557, %558 : vector<1x8x128xi1>, vector<1x8x128xf32>
      %560 = arith.addf %554, %559 : vector<1x8x128xf32>
      %c0_185 = arith.constant 0 : index
      %c0_186 = arith.constant 0 : index
      %c0_187 = arith.constant 0 : index
      %561 = vector.load %arg8[%c0_185, %c0_186, %c0_187] : memref<1x8x128xf32, #tpu.memory_space<vmem>>, vector<1x8x128xf32>
      %562 = arith.addf %561, %560 : vector<1x8x128xf32>
      %c0_188 = arith.constant 0 : index
      %c0_189 = arith.constant 0 : index
      %c0_190 = arith.constant 0 : index
      %563 = vector.load %arg8[%c0_188, %c0_189, %c0_190] : memref<1x8x128xf32, #tpu.memory_space<vmem>>, vector<1x8x128xf32>
      tpu.vector_store %arg8[%c0_188, %c0_189, %c0_190], %562 {strides = array<i32>} : memref<1x8x128xf32, #tpu.memory_space<vmem>>, vector<1x8x128xf32>,
    } else {
    }
    return
  }
  func.func @transform_0(%arg0: i32, %arg1: i32) -> (i32, i32, i32, i32) {
    %c0_i32 = arith.constant 0 : i32
    %c0_i32_0 = arith.constant 0 : i32
    %c0_i32_1 = arith.constant 0 : i32
    return %arg0, %c0_i32, %arg1, %c0_i32_0 : i32, i32, i32, i32
  }
  func.func @transform_1(%arg0: i32, %arg1: i32) -> (i32, i32, i32) {
    %c0_i32 = arith.constant 0 : i32
    %c0_i32_0 = arith.constant 0 : i32
    return %arg0, %arg1, %c0_i32 : i32, i32, i32
  }
  func.func @transform_2(%arg0: i32, %arg1: i32) -> (i32, i32) {
    %c0_i32 = arith.constant 0 : i32
    %c0_i32_0 = arith.constant 0 : i32
    %c0_i32_1 = arith.constant 0 : i32
    return %c0_i32, %c0_i32_0 : i32, i32
  }
  func.func @transform_3(%arg0: i32, %arg1: i32) -> (i32, i32) {
    %c0_i32 = arith.constant 0 : i32
    %c0_i32_0 = arith.constant 0 : i32
    %c0_i32_1 = arith.constant 0 : i32
    return %c0_i32, %c0_i32_0 : i32, i32
  }
  func.func @transform_4(%arg0: i32, %arg1: i32) -> (i32, i32) {
    %c0_i32 = arith.constant 0 : i32
    %c0_i32_0 = arith.constant 0 : i32
    %c0_i32_1 = arith.constant 0 : i32
    return %c0_i32, %c0_i32_0 : i32, i32
  }
  func.func @transform_5(%arg0: i32, %arg1: i32) -> (i32, i32) {
    %c0_i32 = arith.constant 0 : i32
    %c0_i32_0 = arith.constant 0 : i32
    %c0_i32_1 = arith.constant 0 : i32
    return %c0_i32, %c0_i32_0 : i32, i32
  }
  func.func @transform_6(%arg0: i32, %arg1: i32) -> (i32, i32, i32) {
    %c0_i32 = arith.constant 0 : i32
    %c0_i32_0 = arith.constant 0 : i32
    %c0_i32_1 = arith.constant 0 : i32
    return %arg0, %c0_i32, %c0_i32_0 : i32, i32, i32
  }
}

</mosaic_0001>

<llo_original>
// kernel: tpu_custom_call.1
$region0: #{tpu_custom_call.1}
  #allocation0 [shape = 'u32[]', space=smem, size = 0x4, offset = 0x4, fixed_abs, tag = 'smem constant byte address 0x4 - core index']
  #allocation1 [shape = 'u32[144,128]{1,0:T(1,128)}', space=vmem, size = 0x12000, scoped, tag = 'internal scratch']
  #allocation2 [shape = 'f32[2,4,16]{2,1,0:T(4,128)}', space=vmem, size = 0x1000, scoped, tag = 'scratch operand']
  %s0 = inlined_call_operand.hbm [shape: f32[2,3,16,16], index: 0, kind: input, shape index: {}]
  %s1 = inlined_call_operand.vmem [shape: s8[2,16,16], index: 1, kind: input, shape index: {}]
  %s2 = inlined_call_operand.vmem [shape: bf16[4,16], index: 2, kind: input, shape index: {}]
  %s3 = inlined_call_operand.vmem [shape: bf16[64,16], index: 3, kind: input, shape index: {}]
  %s4 = inlined_call_operand.vmem [shape: f32[3,4], index: 4, kind: input, shape index: {}]
  %s5 = inlined_call_operand.vmem [shape: f32[16,12], index: 5, kind: input, shape index: {}]
  %s6 = inlined_call_operand.hbm [shape: f32[1,8,128], index: 6, kind: output, shape index: {}]
  %s7 = sld [smem:[#allocation0]]
  $region46: #{tpu_custom_call.1} parent=0
    _
  %s9 = ssub.s32 1, %s7
  %s10 = scalar_select 0, %s9, %s7
  $region1: #{tpu_custom_call.1} parent=0
    #allocation3 [shape = 'u8[49152]{0}', space=vmem, size = 0xc000, scoped, tag = 'input window, operand 0, single buffered']
    #allocation4 [shape = 's32[1]{0}', space=sflag, size = 0x4, scoped, tag = 'scoped memory for tpu_custom_call.1']
    #allocation5 [shape = 's32[1]{0}', space=sflag, size = 0x4, scoped, tag = 'scoped memory for tpu_custom_call.1']
    #allocation6 [shape = 'u8[4096]{0}', space=vmem, size = 0x1000, scoped, tag = 'output window, operand 0, single buffered']
    %11 = vsyncpa [#allocation4], 0
    %12 = vsyncpa [#allocation5], 0
    // Predicated region
    $region2: #{tpu_custom_call.1} parent=1 // pred_check
      _
    $region3: #{tpu_custom_call.1} parent=1 // pred_check_branch
      %14 = sbr.rel (0) target = $region5
    $region4: #{tpu_custom_call.1} parent=1 // pred_region
      %s16 = ssub.s32 1536, 1536
      %17 = vsyncadd [#allocation4], %s16
      %s18 = sshll.u32 [#allocation3], 4
      %s19 = int_to_ptr.vmem [resolvable:$true] %s18
      %24 = dma.hbm_to_vmem [thread:$0]  %s0, 1536, %s19, [#allocation4], 128, 128, 8
    $region5: #{tpu_custom_call.1} parent=1 // pred_fallthru
      _
    // Predicated region
    $region6: #{tpu_custom_call.1} parent=1 // pred_check
      _
    $region7: #{tpu_custom_call.1} parent=1 // pred_check_branch
      %26 = sbr.rel (0) target = $region9
    $region8: #{tpu_custom_call.1} parent=1 // pred_region
      _
    $region9: #{tpu_custom_call.1} parent=1 // pred_fallthru
      _
    // Predicated region
    $region10: #{tpu_custom_call.1} parent=1 // pred_check
      _
    $region11: #{tpu_custom_call.1} parent=1 // pred_check_branch
      %28 = sbr.rel (0) target = $region13
    $region12: #{tpu_custom_call.1} parent=1 // pred_region
      _
    $region13: #{tpu_custom_call.1} parent=1 // pred_fallthru
      _
    // Predicated region
    $region14: #{tpu_custom_call.1} parent=1 // pred_check
      _
    $region15: #{tpu_custom_call.1} parent=1 // pred_check_branch
      %30 = sbr.rel (0) target = $region17
    $region16: #{tpu_custom_call.1} parent=1 // pred_region
      _
    $region17: #{tpu_custom_call.1} parent=1 // pred_fallthru
      _
    // Predicated region
    $region18: #{tpu_custom_call.1} parent=1 // pred_check
      _
    $region19: #{tpu_custom_call.1} parent=1 // pred_check_branch
      %32 = sbr.rel (0) target = $region21
    $region20: #{tpu_custom_call.1} parent=1 // pred_region
      _
    $region21: #{tpu_custom_call.1} parent=1 // pred_fallthru
      _
    // Predicated region
    $region22: #{tpu_custom_call.1} parent=1 // pred_check
      _
    $region23: #{tpu_custom_call.1} parent=1 // pred_check_branch
      %34 = sbr.rel (0) target = $region25
    $region24: #{tpu_custom_call.1} parent=1 // pred_region
      _
    $region25: #{tpu_custom_call.1} parent=1 // pred_fallthru
      _
    // Predicated region
    $region26: #{tpu_custom_call.1} parent=1 // pred_check
      _
    $region27: #{tpu_custom_call.1} parent=1 // pred_check_branch
      %36 = sbr.rel (0) target = $region29
    $region28: #{tpu_custom_call.1} parent=1 // pred_region
      %37 = dma.done [#allocation4], 1536
    $region29: #{tpu_custom_call.1} parent=1 // pred_fallthru
      _
    %p39 = scmp.eq.s32.totalorder 0, 0
    // Predicated region
    $region30: #{tpu_custom_call.1} parent=1 // pred_check
      %p40 = pneg %p39
    $region31: #{tpu_custom_call.1} parent=1 // pred_check_branch
      %42 = sbr.rel (%p40) target = $region33
    $region32: #{tpu_custom_call.1} parent=1 // pred_region
      %43 = vst [vmem:[#allocation6] sm:$0xff] 0.0
    $region33: #{tpu_custom_call.1} parent=1 // pred_fallthru
      _
    %v44 = vld [vmem:[%s1] sm:$0x3]
    %v45 = vld [vmem:[%s1 + $0x2] sm:$0x3]
    %v46 = vld [vmem:[%s1 + $0x4] sm:$0x3]
    %v47 = vld [vmem:[%s1 + $0x6] sm:$0x3]
    %v48 = vunpack.c.0.s8 %v44
    %v49 = vunpack.c.0.s8 %v45
    %v50 = vunpack.c.0.s8 %v46
    %v51 = vunpack.c.0.s8 %v47
    %v52 = vld [vmem:[#allocation3] sm:$0xff]
    %v53 = vld [vmem:[#allocation3 + $0x8] sm:$0xff]
    %v54 = vld [vmem:[#allocation3 + $0x10] sm:$0xff]
    %v55 = vld [vmem:[#allocation3 + $0x18] sm:$0xff]
    %v56 = vld [vmem:[#allocation3 + $0x20] sm:$0xff]
    %v57 = vld [vmem:[#allocation3 + $0x28] sm:$0xff]
    %v58 = vld [vmem:[#allocation3 + $0x30] sm:$0xff]
    %v59 = vld [vmem:[#allocation3 + $0x38] sm:$0xff]
    %v60 = vld [vmem:[#allocation3 + $0x40] sm:$0xff]
    %v61 = vld [vmem:[#allocation3 + $0x48] sm:$0xff]
    %v62 = vld [vmem:[#allocation3 + $0x50] sm:$0xff]
    %v63 = vld [vmem:[#allocation3 + $0x58] sm:$0xff]
    %v64 = vmax.f32 %v52, %v54
    %v65 = vmax.f32 %v53, %v55
    %v66 = vmax.f32 %v58, %v60
    %v67 = vmax.f32 %v59, %v61
    %v68 = vmax.f32 %v64, %v56
    %v69 = vmax.f32 %v65, %v57
    %v70 = vmax.f32 %v66, %v62
    %v71 = vmax.f32 %v67, %v63
    %v72 = vsub.f32 %v52, %v68
    %v73 = vsub.f32 %v53, %v69
    %v74 = vsub.f32 %v58, %v70
    %v75 = vsub.f32 %v59, %v71
    %v76 = vmul.f32 %v72, 1.442695
    %v77 = vpow.pop %v76
    %v78 = vmul.f32 %v73, 1.442695
    %v79 = vpow.pop %v78
    %v80 = vmul.f32 %v74, 1.442695
    %v81 = vpow.pop %v80
    %v82 = vmul.f32 %v75, 1.442695
    %v83 = vpow.pop %v82
    %v84 = vsub.f32 %v54, %v68
    %v85 = vsub.f32 %v55, %v69
    %v86 = vsub.f32 %v60, %v70
    %v87 = vsub.f32 %v61, %v71
    %v88 = vmul.f32 %v84, 1.442695
    %v89 = vpow.pop %v88
    %v90 = vmul.f32 %v85, 1.442695
    %v91 = vpow.pop %v90
    %v92 = vmul.f32 %v86, 1.442695
    %v93 = vpow.pop %v92
    %v94 = vmul.f32 %v87, 1.442695
    %v95 = vpow.pop %v94
    %v96 = vsub.f32 %v56, %v68
    %v97 = vsub.f32 %v57, %v69
    %v98 = vsub.f32 %v62, %v70
    %v99 = vsub.f32 %v63, %v71
    %v100 = vmul.f32 %v96, 1.442695
    %v101 = vpow.pop %v100
    %v102 = vmul.f32 %v97, 1.442695
    %v103 = vpow.pop %v102
    %v104 = vmul.f32 %v98, 1.442695
    %v105 = vpow.pop %v104
    %v106 = vmul.f32 %v99, 1.442695
    %v107 = vpow.pop %v106
    %v108 = vadd.f32 %v77, %v89
    %v109 = vadd.f32 %v79, %v91
    %v110 = vadd.f32 %v81, %v93
    %v111 = vadd.f32 %v83, %v95
    %v112 = vadd.f32 %v108, %v101
    %v113 = vadd.f32 %v109, %v103
    %v114 = vadd.f32 %v110, %v105
    %v115 = vadd.f32 %v111, %v107
    %v116 = vrcp.pop %v112
    %v117 = vrcp.pop %v113
    %v118 = vrcp.pop %v114
    %v119 = vrcp.pop %v115
    %v120 = vmul.f32 %v77, %v116
    %v121 = vmul.f32 %v79, %v117
    %v122 = vmul.f32 %v81, %v118
    %v123 = vmul.f32 %v83, %v119
    %v124 = vmul.f32 %v89, %v116
    %v125 = vmul.f32 %v91, %v117
    %v126 = vmul.f32 %v93, %v118
    %v127 = vmul.f32 %v95, %v119
    %v128 = vmul.f32 %v101, %v116
    %v129 = vmul.f32 %v103, %v117
    %v130 = vmul.f32 %v105, %v118
    %v131 = vmul.f32 %v107, %v119
    %vm132 = vcmp.eq.s32.totalorder %v48, 0
    %vm133 = vcmp.eq.s32.totalorder %v49, 0
    %vm134 = vcmp.eq.s32.totalorder %v50, 0
    %vm135 = vcmp.eq.s32.totalorder %v51, 0
    %v136 = vsel %vm132, 1, 0
    %v137 = vsel %vm133, 1, 0
    %v138 = vsel %vm134, 1, 0
    %v139 = vsel %vm135, 1, 0
    %v140 = vcvt.s32.f32 %v136
    %v141 = vcvt.s32.f32 %v137
    %v142 = vcvt.s32.f32 %v138
    %v143 = vcvt.s32.f32 %v139
    %vm144 = vcmp.eq.s32.totalorder %v48, 1
    %vm145 = vcmp.eq.s32.totalorder %v49, 1
    %vm146 = vcmp.eq.s32.totalorder %v50, 1
    %vm147 = vcmp.eq.s32.totalorder %v51, 1
    %v148 = vsel %vm144, 1, 0
    %v149 = vsel %vm145, 1, 0
    %v150 = vsel %vm146, 1, 0
    %v151 = vsel %vm147, 1, 0
    %v152 = vcvt.s32.f32 %v148
    %v153 = vcvt.s32.f32 %v149
    %v154 = vcvt.s32.f32 %v150
    %v155 = vcvt.s32.f32 %v151
    %v156 = vsel %vm144, %v54, %v56
    %v157 = vsel %vm145, %v55, %v57
    %v158 = vsel %vm146, %v60, %v62
    %v159 = vsel %vm147, %v61, %v63
    %v160 = vsel %vm132, %v52, %v156
    %v161 = vsel %vm133, %v53, %v157
    %v162 = vsel %vm134, %v58, %v158
    %v163 = vsel %vm135, %v59, %v159
    %v164 = vlog2.pop %v112
    %v165 = vmul.f32 %v164, 0.6931472
    %v166 = vlog2.pop %v113
    %v167 = vmul.f32 %v166, 0.6931472
    %v168 = vlog2.pop %v114
    %v169 = vmul.f32 %v168, 0.6931472
    %v170 = vlog2.pop %v115
    %v171 = vmul.f32 %v170, 0.6931472
    %v172 = vadd.f32 %v68, %v165
    %v173 = vadd.f32 %v69, %v167
    %v174 = vadd.f32 %v70, %v169
    %v175 = vadd.f32 %v71, %v171
    %v176 = vsub.f32 %v172, %v160
    %v177 = vsub.f32 %v173, %v161
    %v178 = vsub.f32 %v174, %v162
    %v179 = vsub.f32 %v175, %v163
    %vm180 = vcmask 130048
    %v181 = vsel %vm180, %v176, 0.0
    %v182 = vsel %vm180, %v177, 0.0
    %v183 = vadd.f32 %v181, %v182
    %v184 = vsel %vm180, %v178, 0.0
    %v185 = vadd.f32 %v183, %v184
    %v186 = vsel %vm180, %v179, 0.0
    %v187 = vadd.f32 %v185, %v186
    %188 = vadd.xlane.f32.xlu0 %v187
    %v189 = vpop.xlane.xlu0 %188
    %v190 = vrot.slane %v189, 4
    %v191 = vadd.f32 %v189, %v190
    %v192 = vrot.slane %v191, 2
    %v193 = vadd.f32 %v191, %v192
    %v194 = vrot.slane %v193, 1
    %v195 = vadd.f32 %v193, %v194
    %s196 = vtos %v195
    %v197 = vsub.f32 %v152, %v124
    %v198 = vsub.f32 %v153, %v125
    %v199 = vsub.f32 %v154, %v126
    %v200 = vsub.f32 %v155, %v127
    %v201 = vand.u32 2147483647, %v197
    %v202 = vand.u32 2147483647, %v198
    %v203 = vand.u32 2147483647, %v199
    %v204 = vand.u32 2147483647, %v200
    %vm205 = vcmp.eq.s32.totalorder %v48, 2
    %vm206 = vcmp.eq.s32.totalorder %v49, 2
    %vm207 = vcmp.eq.s32.totalorder %v50, 2
    %vm208 = vcmp.eq.s32.totalorder %v51, 2
    %v209 = vsel %vm205, 1, 0
    %v210 = vsel %vm206, 1, 0
    %v211 = vsel %vm207, 1, 0
    %v212 = vsel %vm208, 1, 0
    %v213 = vcvt.s32.f32 %v209
    %v214 = vcvt.s32.f32 %v210
    %v215 = vcvt.s32.f32 %v211
    %v216 = vcvt.s32.f32 %v212
    %v217 = vsub.f32 %v213, %v128
    %v218 = vsub.f32 %v214, %v129
    %v219 = vsub.f32 %v215, %v130
    %v220 = vsub.f32 %v216, %v131
    %v221 = vand.u32 2147483647, %v217
    %v222 = vand.u32 2147483647, %v218
    %v223 = vand.u32 2147483647, %v219
    %v224 = vand.u32 2147483647, %v220
    %v225 = vadd.f32 %v201, %v221
    %v226 = vadd.f32 %v202, %v222
    %v227 = vadd.f32 %v203, %v223
    %v228 = vadd.f32 %v204, %v224
    %v229 = vsel %vm180, %v225, 0.0
    %v230 = vsel %vm180, %v226, 0.0
    %v231 = vadd.f32 %v229, %v230
    %v232 = vsel %vm180, %v227, 0.0
    %v233 = vadd.f32 %v231, %v232
    %v234 = vsel %vm180, %v228, 0.0
    %v235 = vadd.f32 %v233, %v234
    %236 = vadd.xlane.f32.xlu0 %v235
    %v237 = vpop.xlane.xlu0 %236
    %v238 = vrot.slane %v237, 4
    %v239 = vadd.f32 %v237, %v238
    %v240 = vrot.slane %v239, 2
    %v241 = vadd.f32 %v239, %v240
    %v242 = vrot.slane %v241, 1
    %v243 = vadd.f32 %v241, %v242
    %s244 = vtos %v243
    %v245 = vlaneseq
    %v246 = vand.u32 %v245, 127
    %v247 = vld [vmem:[#allocation6] sm:$0xff]
    %vm248 = vcmp.eq.s32.totalorder %v246, 0
    %v249 = vstv %s196
    %v250 = vsel %vm248, %v249, 0.0
    %vm251 = vcmp.eq.s32.totalorder %v246, 1
    %v252 = vstv %s244
    %v253 = vsel %vm251, %v252, 0.0
    %v254 = vadd.f32 %v250, %v253
    %v255 = vadd.f32 %v247, %v254
    %256 = vst [vmem:[#allocation6] sm:$0xff] %v255
    %v257 = vld [vmem:[%s2] sm:$0x3]
    %v258 = vld [vmem:[%s3] sm:$0xf]
    %v259 = vld [vmem:[%s3 + $0x4] sm:$0xf]
    %v260 = vld [vmem:[%s3 + $0x8] sm:$0xf]
    %v261 = vld [vmem:[%s3 + $0xc] sm:$0xf]
    %v262 = vld [vmem:[%s3 + $0x10] sm:$0xf]
    %v263 = vld [vmem:[%s3 + $0x14] sm:$0xf]
    %v264 = vld [vmem:[%s3 + $0x18] sm:$0xf]
    %v265 = vld [vmem:[%s3 + $0x1c] sm:$0xf]
    %268 = vrot.lane.b32.xlu0 %v152, 16
    %v269 = vpop.permute.xlu0 %268
    %270 = vrot.lane.b32.xlu0 %v153, 16
    %v271 = vpop.permute.xlu0 %270
    %276 = vrot.lane.b32.xlu0 %v120, 32
    %v277 = vpop.permute.xlu0 %276
    %278 = vrot.lane.b32.xlu0 %v121, 32
    %v279 = vpop.permute.xlu0 %278
    %284 = vrot.lane.b32.xlu0 %v124, 48
    %v285 = vpop.permute.xlu0 %284
    %286 = vrot.lane.b32.xlu0 %v125, 48
    %v287 = vpop.permute.xlu0 %286
    %v290 = vsel %vm180, %v140, %v269
    %v291 = vsel %vm180, %v141, %v271
    %vm292 = vcmask 261120
    %v293 = vsel %vm292, %v290, %v277
    %v294 = vsel %vm292, %v291, %v279
    %vm295 = vcmask 392192
    %v296 = vsel %vm295, %v293, %v285
    %v297 = vsel %vm295, %v294, %v287
    %v298 = vpack.c.bf16 %v297, %v296
    %v300 = vsel %vm180, %v257, 0
    %302 = vmatprep.subr.bf16.mxu0 0
    %303 = vmatpush1.bf16.msra.mxu0 0
    %304 = vmatprep.subr.bf16.mxu0 0
    %305 = vmatpush1.bf16.msra.mxu0 0
    %306 = vmatprep.subr.bf16.mxu0 0
    %307 = vmatpush1.bf16.msra.mxu0 0
    %308 = vmatprep.subr.bf16.mxu0 0
    %309 = vmatpush1.bf16.msra.mxu0 0
    %310 = vmatprep.subr.bf16.mxu0 0
    %311 = vmatpush1.bf16.msra.mxu0 0
    %312 = vmatprep.subr.bf16.mxu0 0
    %313 = vmatpush1.bf16.msra.mxu0 0
    %314 = vmatprep.subr.bf16.mxu0 0
    %315 = vmatpush1.bf16.msra.mxu0 0
    %316 = vmatprep.subr.bf16.mxu0 0
    %317 = vmatpush1.bf16.msra.mxu0 %v298
    %318 = vmatprep.subr.bf16.mxu0 0
    %319 = vmatpush2.bf16.msra.mxu0 0
    %320 = vmatprep.subr.bf16.mxu0 0
    %321 = vmatpush2.bf16.msra.mxu0 0
    %322 = vmatprep.subr.bf16.mxu0 0
    %323 = vmatpush2.bf16.msra.mxu0 0
    %324 = vmatprep.subr.bf16.mxu0 0
    %325 = vmatpush2.bf16.msra.mxu0 0
    %326 = vmatprep.subr.bf16.mxu0 0
    %327 = vmatpush2.bf16.msra.mxu0 0
    %328 = vmatprep.subr.bf16.mxu0 0
    %329 = vmatpush2.bf16.msra.mxu0 0
    %330 = vmatprep.subr.bf16.mxu0 0
    %331 = vmatpush2.bf16.msra.mxu0 0
    %332 = vmatprep.subr.bf16.mxu0 0
    %333 = vmatpush2.bf16.msra.mxu0 0
    %334 = vmatprep.mubr.bf16.mxu0 0
    %335 = vmatmul.mubr.bf16.gmra.mxu0 %v300
    %v336 = vpop.f32.mrf.mxu0
    %v337 = vadd.f32 0.0, %v336
    %v338 = vpop.f32.mrf.mxu0
    %v339 = vpop.f32.mrf.mxu0
    %v340 = vpop.f32.mrf.mxu0
    %341 = vdwg.mxu0
    %v342 = vpack.c.bf16 %v337, %v337
    %v351 = vunpack.c.l.b16 %v258
    %v352 = vunpack.c.l.b16 %v259
    %v353 = vunpack.c.l.b16 %v260
    %v354 = vunpack.c.l.b16 %v261
    %v355 = vunpack.c.l.b16 %v262
    %v356 = vunpack.c.l.b16 %v263
    %v357 = vunpack.c.l.b16 %v264
    %v358 = vunpack.c.l.b16 %v265
    %v359 = vpack.c.b16 %v352, %v351
    %v360 = vpack.c.b16 %v354, %v353
    %v361 = vpack.c.b16 %v356, %v355
    %v362 = vpack.c.b16 %v358, %v357
    %vm367 = vcmask 523264
    %v369 = vsel %vm367, %v342, 0
    %371 = vmatprep.subr.bf16.mxu0 0
    %372 = vmatpush1.bf16.msra.mxu0 0
    %373 = vmatprep.subr.bf16.mxu0 0
    %374 = vmatpush1.bf16.msra.mxu0 0
    %375 = vmatprep.subr.bf16.mxu0 0
    %376 = vmatpush1.bf16.msra.mxu0 0
    %377 = vmatprep.subr.bf16.mxu0 0
    %378 = vmatpush1.bf16.msra.mxu0 0
    %379 = vmatprep.subr.bf16.mxu0 0
    %380 = vmatpush1.bf16.msra.mxu0 %v362
    %381 = vmatprep.subr.bf16.mxu0 0
    %382 = vmatpush1.bf16.msra.mxu0 %v361
    %383 = vmatprep.subr.bf16.mxu0 0
    %384 = vmatpush1.bf16.msra.mxu0 %v360
    %385 = vmatprep.subr.bf16.mxu0 0
    %386 = vmatpush1.bf16.msra.mxu0 %v359
    %387 = vmatprep.subr.bf16.mxu0 0
    %388 = vmatpush2.bf16.msra.mxu0 0
    %389 = vmatprep.subr.bf16.mxu0 0
    %390 = vmatpush2.bf16.msra.mxu0 0
    %391 = vmatprep.subr.bf16.mxu0 0
    %392 = vmatpush2.bf16.msra.mxu0 0
    %393 = vmatprep.subr.bf16.mxu0 0
    %394 = vmatpush2.bf16.msra.mxu0 0
    %395 = vmatprep.subr.bf16.mxu0 0
    %396 = vmatpush2.bf16.msra.mxu0 0
    %397 = vmatprep.subr.bf16.mxu0 0
    %398 = vmatpush2.bf16.msra.mxu0 0
    %399 = vmatprep.subr.bf16.mxu0 0
    %400 = vmatpush2.bf16.msra.mxu0 0
    %401 = vmatprep.subr.bf16.mxu0 0
    %402 = vmatpush2.bf16.msra.mxu0 0
    %403 = vmatprep.mubr.bf16.mxu0 0
    %404 = vmatmul.mubr.bf16.gmra.mxu0 %v369
    %v405 = vpop.f32.mrf.mxu0
    %v406 = vadd.f32 0.0, %v405
    %v407 = vpop.f32.mrf.mxu0
    %v408 = vpop.f32.mrf.mxu0
    %v409 = vpop.f32.mrf.mxu0
    %410 = vdwg.mxu0
    %413 = vrot.lane.b32.xlu0 %v154, 16
    %v414 = vpop.permute.xlu0 %413
    %415 = vrot.lane.b32.xlu0 %v155, 16
    %v416 = vpop.permute.xlu0 %415
    %421 = vrot.lane.b32.xlu0 %v122, 32
    %v422 = vpop.permute.xlu0 %421
    %423 = vrot.lane.b32.xlu0 %v123, 32
    %v424 = vpop.permute.xlu0 %423
    %429 = vrot.lane.b32.xlu0 %v126, 48
    %v430 = vpop.permute.xlu0 %429
    %431 = vrot.lane.b32.xlu0 %v127, 48
    %v432 = vpop.permute.xlu0 %431
    %v435 = vsel %vm180, %v142, %v414
    %v436 = vsel %vm180, %v143, %v416
    %v437 = vsel %vm292, %v435, %v422
    %v438 = vsel %vm292, %v436, %v424
    %v439 = vsel %vm295, %v437, %v430
    %v440 = vsel %vm295, %v438, %v432
    %v441 = vpack.c.bf16 %v440, %v439
    %442 = vmatprep.subr.bf16.mxu0 0
    %443 = vmatpush1.bf16.msra.mxu0 0
    %444 = vmatprep.subr.bf16.mxu0 0
    %445 = vmatpush1.bf16.msra.mxu0 0
    %446 = vmatprep.subr.bf16.mxu0 0
    %447 = vmatpush1.bf16.msra.mxu0 0
    %448 = vmatprep.subr.bf16.mxu0 0
    %449 = vmatpush1.bf16.msra.mxu0 0
    %450 = vmatprep.subr.bf16.mxu0 0
    %451 = vmatpush1.bf16.msra.mxu0 0
    %452 = vmatprep.subr.bf16.mxu0 0
    %453 = vmatpush1.bf16.msra.mxu0 0
    %454 = vmatprep.subr.bf16.mxu0 0
    %455 = vmatpush1.bf16.msra.mxu0 0
    %456 = vmatprep.subr.bf16.mxu0 0
    %457 = vmatpush1.bf16.msra.mxu0 %v441
    %458 = vmatprep.subr.bf16.mxu0 0
    %459 = vmatpush2.bf16.msra.mxu0 0
    %460 = vmatprep.subr.bf16.mxu0 0
    %461 = vmatpush2.bf16.msra.mxu0 0
    %462 = vmatprep.subr.bf16.mxu0 0
    %463 = vmatpush2.bf16.msra.mxu0 0
    %464 = vmatprep.subr.bf16.mxu0 0
    %465 = vmatpush2.bf16.msra.mxu0 0
    %466 = vmatprep.subr.bf16.mxu0 0
    %467 = vmatpush2.bf16.msra.mxu0 0
    %468 = vmatprep.subr.bf16.mxu0 0
    %469 = vmatpush2.bf16.msra.mxu0 0
    %470 = vmatprep.subr.bf16.mxu0 0
    %471 = vmatpush2.bf16.msra.mxu0 0
    %472 = vmatprep.subr.bf16.mxu0 0
    %473 = vmatpush2.bf16.msra.mxu0 0
    %474 = vmatprep.mubr.bf16.mxu0 0
    %475 = vmatmul.mubr.bf16.gmra.mxu0 %v300
    %v476 = vpop.f32.mrf.mxu0
    %v477 = vadd.f32 0.0, %v476
    %v478 = vpop.f32.mrf.mxu0
    %v479 = vpop.f32.mrf.mxu0
    %v480 = vpop.f32.mrf.mxu0
    %481 = vdwg.mxu0
    %v482 = vpack.c.bf16 %v477, %v477
    %v484 = vsel %vm367, %v482, 0
    %486 = vmatprep.subr.bf16.mxu0 0
    %487 = vmatpush1.bf16.msra.mxu0 0
    %488 = vmatprep.subr.bf16.mxu0 0
    %489 = vmatpush1.bf16.msra.mxu0 0
    %490 = vmatprep.subr.bf16.mxu0 0
    %491 = vmatpush1.bf16.msra.mxu0 0
    %492 = vmatprep.subr.bf16.mxu0 0
    %493 = vmatpush1.bf16.msra.mxu0 0
    %494 = vmatprep.subr.bf16.mxu0 0
    %495 = vmatpush1.bf16.msra.mxu0 %v362
    %496 = vmatprep.subr.bf16.mxu0 0
    %497 = vmatpush1.bf16.msra.mxu0 %v361
    %498 = vmatprep.subr.bf16.mxu0 0
    %499 = vmatpush1.bf16.msra.mxu0 %v360
    %500 = vmatprep.subr.bf16.mxu0 0
    %501 = vmatpush1.bf16.msra.mxu0 %v359
    %502 = vmatprep.subr.bf16.mxu0 0
    %503 = vmatpush2.bf16.msra.mxu0 0
    %504 = vmatprep.subr.bf16.mxu0 0
    %505 = vmatpush2.bf16.msra.mxu0 0
    %506 = vmatprep.subr.bf16.mxu0 0
    %507 = vmatpush2.bf16.msra.mxu0 0
    %508 = vmatprep.subr.bf16.mxu0 0
    %509 = vmatpush2.bf16.msra.mxu0 0
    %510 = vmatprep.subr.bf16.mxu0 0
    %511 = vmatpush2.bf16.msra.mxu0 0
    %512 = vmatprep.subr.bf16.mxu0 0
    %513 = vmatpush2.bf16.msra.mxu0 0
    %514 = vmatprep.subr.bf16.mxu0 0
    %515 = vmatpush2.bf16.msra.mxu0 0
    %516 = vmatprep.subr.bf16.mxu0 0
    %517 = vmatpush2.bf16.msra.mxu0 0
    %518 = vmatprep.mubr.bf16.mxu0 0
    %519 = vmatmul.mubr.bf16.gmra.mxu0 %v484
    %v520 = vpop.f32.mrf.mxu0
    %v521 = vadd.f32 0.0, %v520
    %v522 = vpop.f32.mrf.mxu0
    %v523 = vpop.f32.mrf.mxu0
    %v524 = vpop.f32.mrf.mxu0
    %525 = vdwg.mxu0
    // Predicated region
    $region34: #{tpu_custom_call.1} parent=1 // pred_check
      %p526 = pneg %p39
    $region35: #{tpu_custom_call.1} parent=1 // pred_check_branch
      %528 = sbr.rel (%p526) target = $region37
    $region36: #{tpu_custom_call.1} parent=1 // pred_region
      %530 = vrot.lane.b32.xlu0 %v406, 120
      %v531 = vpop.permute.xlu0 %530
      %v533 = vsub.f32 %v406, %v531
      %v534 = vand.u32 2147483647, %v533
      %vm535 = vcmp.gt.f32.partialorder %v406, 0.0
      %v536 = vsel %vm535, 1, 0
      %v537 = vcvt.s32.f32 %v536
      %vm538 = vcmp.ge.s32.totalorder %v246, 0
      %vm539 = vcmp.lt.s32.totalorder %v246, 4
      %vm540 = vmand %vm538, %vm539
      %v541 = vsel %vm540, %v534, 0.0
      %vm542 = vcmask 60416
      %v543 = vsel %vm542, %v541, 0.0
      %544 = vadd.xlane.f32.xlu0 %v543
      %v545 = vpop.xlane.xlu0 %544
      %v546 = vrot.slane %v545, 4
      %v547 = vadd.f32 %v545, %v546
      %v548 = vrot.slane %v547, 2
      %v549 = vadd.f32 %v547, %v548
      %v550 = vrot.slane %v549, 1
      %v551 = vadd.f32 %v549, %v550
      %s552 = vtos %v551
      %s553 = smul.f32 %s552, 0.0625
      %555 = vrot.lane.b32.xlu0 %v537, 120
      %v556 = vpop.permute.xlu0 %555
      %v558 = vsel %vm540, %v556, 0.0
      %v559 = vsel %vm542, %v558, 0.0
      %560 = vadd.xlane.f32.xlu0 %v559
      %v561 = vpop.xlane.xlu0 %560
      %v562 = vrot.slane %v561, 4
      %v563 = vadd.f32 %v561, %v562
      %v564 = vrot.slane %v563, 2
      %v565 = vadd.f32 %v563, %v564
      %v566 = vrot.slane %v565, 1
      %v567 = vadd.f32 %v565, %v566
      %s568 = vtos %v567
      %vm569 = vcmp.ge.s32.totalorder %v246, 4
      %vm570 = vcmp.lt.s32.totalorder %v246, 8
      %vm571 = vmand %vm569, %vm570
      %v572 = vsel %vm571, %v534, 0.0
      %v573 = vsel %vm542, %v572, 0.0
      %574 = vadd.xlane.f32.xlu0 %v573
      %v575 = vpop.xlane.xlu0 %574
      %v576 = vrot.slane %v575, 4
      %v577 = vadd.f32 %v575, %v576
      %v578 = vrot.slane %v577, 2
      %v579 = vadd.f32 %v577, %v578
      %v580 = vrot.slane %v579, 1
      %v581 = vadd.f32 %v579, %v580
      %s582 = vtos %v581
      %s583 = smul.f32 %s582, 0.0625
      %v584 = vsel %vm571, %v556, 0.0
      %v585 = vsel %vm542, %v584, 0.0
      %586 = vadd.xlane.f32.xlu0 %v585
      %v587 = vpop.xlane.xlu0 %586
      %v588 = vrot.slane %v587, 4
      %v589 = vadd.f32 %v587, %v588
      %v590 = vrot.slane %v589, 2
      %v591 = vadd.f32 %v589, %v590
      %v592 = vrot.slane %v591, 1
      %v593 = vadd.f32 %v591, %v592
      %s594 = vtos %v593
      %v595 = vld [vmem:[%s4] sm:$0x7]
      %v596 = vld [vmem:[%s5] sm:$0xff]
      %v597 = vld [vmem:[%s5 + $0x8] sm:$0xff]
      %vm598 = vcmask 31744
      %v600 = vsel %vm598, %v595, 0
      %vm602 = vcmask 1043456
      %v603 = vsel %vm602, %v406, 0
      %605 = vmatprep.subr.mxu0 0.0
      %606 = vmatpush1.msra.mxu0 0.0
      %607 = vmatprep.subr.mxu0 0.0
      %608 = vmatpush1.msra.mxu0 0.0
      %609 = vmatprep.subr.mxu0 0.0
      %610 = vmatpush1.msra.mxu0 0.0
      %611 = vmatprep.subr.mxu0 0.0
      %612 = vmatpush1.msra.mxu0 0.0
      %613 = vmatprep.subr.mxu0 0.0
      %614 = vmatpush1.msra.mxu0 0.0
      %615 = vmatprep.subr.mxu0 0.0
      %616 = vmatpush1.msra.mxu0 0.0
      %617 = vmatprep.subr.mxu0 0.0
      %618 = vmatpush1.msra.mxu0 0.0
      %619 = vmatprep.subr.mxu0 0.0
      %620 = vmatpush1.msra.mxu0 0.0
      %621 = vmatprep.subr.mxu0 0.0
      %622 = vmatpush1.msra.mxu0 0.0
      %623 = vmatprep.subr.mxu0 0.0
      %624 = vmatpush1.msra.mxu0 0.0
      %625 = vmatprep.subr.mxu0 0.0
      %626 = vmatpush1.msra.mxu0 0.0
      %627 = vmatprep.subr.mxu0 0.0
      %628 = vmatpush1.msra.mxu0 0.0
      %629 = vmatprep.subr.mxu0 0.0
      %630 = vmatpush1.msra.mxu0 0.0
      %631 = vmatprep.subr.mxu0 0.0
      %632 = vmatpush1.msra.mxu0 0.0
      %633 = vmatprep.subr.mxu0 0.0
      %634 = vmatpush1.msra.mxu0 0.0
      %635 = vmatprep.subr.mxu0 0.0
      %636 = vmatpush1.msra.mxu0 %v603
      %637 = vmatprep.subr.mxu0 0.0
      %638 = vmatpush2.msra.mxu0 0.0
      %639 = vmatprep.subr.mxu0 0.0
      %640 = vmatpush2.msra.mxu0 0.0
      %641 = vmatprep.subr.mxu0 0.0
      %642 = vmatpush2.msra.mxu0 0.0
      %643 = vmatprep.subr.mxu0 0.0
      %644 = vmatpush2.msra.mxu0 0.0
      %645 = vmatprep.subr.mxu0 0.0
      %646 = vmatpush2.msra.mxu0 0.0
      %647 = vmatprep.subr.mxu0 0.0
      %648 = vmatpush2.msra.mxu0 0.0
      %649 = vmatprep.subr.mxu0 0.0
      %650 = vmatpush2.msra.mxu0 0.0
      %651 = vmatprep.subr.mxu0 0.0
      %652 = vmatpush2.msra.mxu0 0.0
      %653 = vmatprep.subr.mxu0 0.0
      %654 = vmatpush2.msra.mxu0 0.0
      %655 = vmatprep.subr.mxu0 0.0
      %656 = vmatpush2.msra.mxu0 0.0
      %657 = vmatprep.subr.mxu0 0.0
      %658 = vmatpush2.msra.mxu0 0.0
      %659 = vmatprep.subr.mxu0 0.0
      %660 = vmatpush2.msra.mxu0 0.0
      %661 = vmatprep.subr.mxu0 0.0
      %662 = vmatpush2.msra.mxu0 0.0
      %663 = vmatprep.subr.mxu0 0.0
      %664 = vmatpush2.msra.mxu0 0.0
      %665 = vmatprep.subr.mxu0 0.0
      %666 = vmatpush2.msra.mxu0 0.0
      %667 = vmatprep.subr.mxu0 0.0
      %668 = vmatpush2.msra.mxu0 0.0
      %669 = vmatprep.mubr.f32.mxu0 0.0
      %670 = vmatmul.mubr.f32.gmra.mxu0 %v600
      %v671 = vpop.f32.mrf.mxu0
      %v672 = vadd.f32 0.0, %v671
      %v673 = vpop.f32.mrf.mxu0
      %674 = vdwg.mxu0
      %v676 = vsel %vm180, %v672, 0
      %678 = vmatprep.subr.mxu0 0.0
      %679 = vmatpush1.msra.mxu0 0.0
      %680 = vmatprep.subr.mxu0 0.0
      %681 = vmatpush1.msra.mxu0 0.0
      %682 = vmatprep.subr.mxu0 0.0
      %683 = vmatpush1.msra.mxu0 0.0
      %684 = vmatprep.subr.mxu0 0.0
      %685 = vmatpush1.msra.mxu0 0.0
      %686 = vmatprep.subr.mxu0 0.0
      %687 = vmatpush1.msra.mxu0 0.0
      %688 = vmatprep.subr.mxu0 0.0
      %689 = vmatpush1.msra.mxu0 0.0
      %690 = vmatprep.subr.mxu0 0.0
      %691 = vmatpush1.msra.mxu0 0.0
      %692 = vmatprep.subr.mxu0 0.0
      %693 = vmatpush1.msra.mxu0 0.0
      %694 = vmatprep.subr.mxu0 0.0
      %695 = vmatpush1.msra.mxu0 0.0
      %696 = vmatprep.subr.mxu0 0.0
      %697 = vmatpush1.msra.mxu0 0.0
      %698 = vmatprep.subr.mxu0 0.0
      %699 = vmatpush1.msra.mxu0 0.0
      %700 = vmatprep.subr.mxu0 0.0
      %701 = vmatpush1.msra.mxu0 0.0
      %702 = vmatprep.subr.mxu0 0.0
      %703 = vmatpush1.msra.mxu0 0.0
      %704 = vmatprep.subr.mxu0 0.0
      %705 = vmatpush1.msra.mxu0 0.0
      %706 = vmatprep.subr.mxu0 0.0
      %707 = vmatpush1.msra.mxu0 %v597
      %708 = vmatprep.subr.mxu0 0.0
      %709 = vmatpush1.msra.mxu0 %v596
      %710 = vmatprep.subr.mxu0 0.0
      %711 = vmatpush2.msra.mxu0 0.0
      %712 = vmatprep.subr.mxu0 0.0
      %713 = vmatpush2.msra.mxu0 0.0
      %714 = vmatprep.subr.mxu0 0.0
      %715 = vmatpush2.msra.mxu0 0.0
      %716 = vmatprep.subr.mxu0 0.0
      %717 = vmatpush2.msra.mxu0 0.0
      %718 = vmatprep.subr.mxu0 0.0
      %719 = vmatpush2.msra.mxu0 0.0
      %720 = vmatprep.subr.mxu0 0.0
      %721 = vmatpush2.msra.mxu0 0.0
      %722 = vmatprep.subr.mxu0 0.0
      %723 = vmatpush2.msra.mxu0 0.0
      %724 = vmatprep.subr.mxu0 0.0
      %725 = vmatpush2.msra.mxu0 0.0
      %726 = vmatprep.subr.mxu0 0.0
      %727 = vmatpush2.msra.mxu0 0.0
      %728 = vmatprep.subr.mxu0 0.0
      %729 = vmatpush2.msra.mxu0 0.0
      %730 = vmatprep.subr.mxu0 0.0
      %731 = vmatpush2.msra.mxu0 0.0
      %732 = vmatprep.subr.mxu0 0.0
      %733 = vmatpush2.msra.mxu0 0.0
      %734 = vmatprep.subr.mxu0 0.0
      %735 = vmatpush2.msra.mxu0 0.0
      %736 = vmatprep.subr.mxu0 0.0
      %737 = vmatpush2.msra.mxu0 0.0
      %738 = vmatprep.subr.mxu0 0.0
      %739 = vmatpush2.msra.mxu0 0.0
      %740 = vmatprep.subr.mxu0 0.0
      %741 = vmatpush2.msra.mxu0 0.0
      %742 = vmatprep.mubr.f32.mxu0 0.0
      %743 = vmatmul.mubr.f32.gmra.mxu0 %v676
      %v744 = vpop.f32.mrf.mxu0
      %v745 = vadd.f32 0.0, %v744
      %v746 = vpop.f32.mrf.mxu0
      %747 = vdwg.mxu0
      %749 = vrot.lane.b32.xlu0 %v745, 122
      %v750 = vpop.permute.xlu0 %749
      %v752 = vsub.f32 %v745, %v750
      %v753 = vand.u32 2147483647, %v752
      %vm754 = vcmp.gt.f32.partialorder %v745, 0.0
      %v755 = vsel %vm754, 1, 0
      %v756 = vcvt.s32.f32 %v755
      %v757 = vlaneseq
      %v758 = vshrl.u32 %v757, 7
      %vm759 = vcmp.ge.s32.totalorder %v758, 0
      %vm760 = vcmp.lt.s32.totalorder %v758, 1
      %vm761 = vmand %vm759, %vm760
      %vm762 = vmand %vm761, %vm538
      %vm763 = vcmp.lt.s32.totalorder %v246, 1
      %vm764 = vmand %vm762, %vm763
      %v765 = vsel %vm764, %v753, 0.0
      %vm766 = vcmask 43008
      %v767 = vsel %vm766, %v765, 0.0
      %768 = vadd.xlane.f32.xlu0 %v767
      %v769 = vpop.xlane.xlu0 %768
      %v770 = vrot.slane %v769, 4
      %v771 = vadd.f32 %v769, %v770
      %v772 = vrot.slane %v771, 2
      %v773 = vadd.f32 %v771, %v772
      %v774 = vrot.slane %v773, 1
      %v775 = vadd.f32 %v773, %v774
      %s776 = vtos %v775
      %s777 = smul.f32 %s776, 0.00390625
      %779 = vrot.lane.b32.xlu0 %v756, 122
      %v780 = vpop.permute.xlu0 %779
      %v782 = vsel %vm764, %v780, 0.0
      %v783 = vsel %vm766, %v782, 0.0
      %784 = vadd.xlane.f32.xlu0 %v783
      %v785 = vpop.xlane.xlu0 %784
      %v786 = vrot.slane %v785, 4
      %v787 = vadd.f32 %v785, %v786
      %v788 = vrot.slane %v787, 2
      %v789 = vadd.f32 %v787, %v788
      %v790 = vrot.slane %v789, 1
      %v791 = vadd.f32 %v789, %v790
      %s792 = vtos %v791
      %vm793 = vcmp.ge.s32.totalorder %v246, 3
      %vm794 = vmand %vm761, %vm793
      %vm795 = vmand %vm794, %vm539
      %v796 = vsel %vm795, %v753, 0.0
      %v797 = vsel %vm766, %v796, 0.0
      %798 = vadd.xlane.f32.xlu0 %v797
      %v799 = vpop.xlane.xlu0 %798
      %v800 = vrot.slane %v799, 4
      %v801 = vadd.f32 %v799, %v800
      %v802 = vrot.slane %v801, 2
      %v803 = vadd.f32 %v801, %v802
      %v804 = vrot.slane %v803, 1
      %v805 = vadd.f32 %v803, %v804
      %s806 = vtos %v805
      %s807 = smul.f32 %s806, 0.00390625
      %v808 = vsel %vm795, %v780, 0.0
      %v809 = vsel %vm766, %v808, 0.0
      %810 = vadd.xlane.f32.xlu0 %v809
      %v811 = vpop.xlane.xlu0 %810
      %v812 = vrot.slane %v811, 4
      %v813 = vadd.f32 %v811, %v812
      %v814 = vrot.slane %v813, 2
      %v815 = vadd.f32 %v813, %v814
      %v816 = vrot.slane %v815, 1
      %v817 = vadd.f32 %v815, %v816
      %s818 = vtos %v817
      %vm819 = vcmp.ge.s32.totalorder %v758, 1
      %vm820 = vcmp.lt.s32.totalorder %v758, 3
      %vm821 = vmand %vm819, %vm820
      %vm822 = vcmp.ge.s32.totalorder %v246, 1
      %vm823 = vmand %vm821, %vm822
      %vm824 = vcmp.lt.s32.totalorder %v246, 3
      %vm825 = vmand %vm823, %vm824
      %v826 = vsel %vm825, %v753, 0.0
      %v827 = vsel %vm766, %v826, 0.0
      %828 = vadd.xlane.f32.xlu0 %v827
      %v829 = vpop.xlane.xlu0 %828
      %v830 = vrot.slane %v829, 4
      %v831 = vadd.f32 %v829, %v830
      %v832 = vrot.slane %v831, 2
      %v833 = vadd.f32 %v831, %v832
      %v834 = vrot.slane %v833, 1
      %v835 = vadd.f32 %v833, %v834
      %s836 = vtos %v835
      %s837 = smul.f32 %s836, 0.015625
      %v838 = vsel %vm825, %v780, 0.0
      %v839 = vsel %vm766, %v838, 0.0
      %840 = vadd.xlane.f32.xlu0 %v839
      %v841 = vpop.xlane.xlu0 %840
      %v842 = vrot.slane %v841, 4
      %v843 = vadd.f32 %v841, %v842
      %v844 = vrot.slane %v843, 2
      %v845 = vadd.f32 %v843, %v844
      %v846 = vrot.slane %v845, 1
      %v847 = vadd.f32 %v845, %v846
      %s848 = vtos %v847
      %vm849 = vmand %vm821, %vm569
      %vm850 = vcmp.lt.s32.totalorder %v246, 6
      %vm851 = vmand %vm849, %vm850
      %v852 = vsel %vm851, %v753, 0.0
      %v853 = vsel %vm766, %v852, 0.0
      %854 = vadd.xlane.f32.xlu0 %v853
      %v855 = vpop.xlane.xlu0 %854
      %v856 = vrot.slane %v855, 4
      %v857 = vadd.f32 %v855, %v856
      %v858 = vrot.slane %v857, 2
      %v859 = vadd.f32 %v857, %v858
      %v860 = vrot.slane %v859, 1
      %v861 = vadd.f32 %v859, %v860
      %s862 = vtos %v861
      %s863 = smul.f32 %s862, 0.015625
      %v864 = vsel %vm851, %v780, 0.0
      %v865 = vsel %vm766, %v864, 0.0
      %866 = vadd.xlane.f32.xlu0 %v865
      %v867 = vpop.xlane.xlu0 %866
      %v868 = vrot.slane %v867, 4
      %v869 = vadd.f32 %v867, %v868
      %v870 = vrot.slane %v869, 2
      %v871 = vadd.f32 %v869, %v870
      %v872 = vrot.slane %v871, 1
      %v873 = vadd.f32 %v871, %v872
      %s874 = vtos %v873
      %vm875 = vcmp.eq.s32.totalorder %v246, 10
      %v876 = vstv %s553
      %v877 = vsel %vm875, %v876, 0.0
      %v878 = vadd.f32 %v877, 0.0
      %vm879 = vcmp.eq.s32.totalorder %v246, 12
      %v880 = vstv %s568
      %v881 = vsel %vm879, %v880, 0.0
      %v882 = vadd.f32 %v878, %v881
      %vm883 = vcmp.eq.s32.totalorder %v246, 11
      %v884 = vstv %s583
      %v885 = vsel %vm883, %v884, 0.0
      %v886 = vadd.f32 %v882, %v885
      %vm887 = vcmp.eq.s32.totalorder %v246, 13
      %v888 = vstv %s594
      %v889 = vsel %vm887, %v888, 0.0
      %v890 = vadd.f32 %v886, %v889
      %vm891 = vcmp.eq.s32.totalorder %v246, 2
      %v892 = vstv %s777
      %v893 = vsel %vm891, %v892, 0.0
      %v894 = vadd.f32 %v890, %v893
      %vm895 = vcmp.eq.s32.totalorder %v246, 4
      %v896 = vstv %s792
      %v897 = vsel %vm895, %v896, 0.0
      %v898 = vadd.f32 %v894, %v897
      %vm899 = vcmp.eq.s32.totalorder %v246, 3
      %v900 = vstv %s807
      %v901 = vsel %vm899, %v900, 0.0
      %v902 = vadd.f32 %v898, %v901
      %vm903 = vcmp.eq.s32.totalorder %v246, 5
      %v904 = vstv %s818
      %v905 = vsel %vm903, %v904, 0.0
      %v906 = vadd.f32 %v902, %v905
      %vm907 = vcmp.eq.s32.totalorder %v246, 6
      %v908 = vstv %s837
      %v909 = vsel %vm907, %v908, 0.0
      %v910 = vadd.f32 %v906, %v909
      %vm911 = vcmp.eq.s32.totalorder %v246, 8
      %v912 = vstv %s848
      %v913 = vsel %vm911, %v912, 0.0
      %v914 = vadd.f32 %v910, %v913
      %vm915 = vcmp.eq.s32.totalorder %v246, 7
      %v916 = vstv %s863
      %v917 = vsel %vm915, %v916, 0.0
      %v918 = vadd.f32 %v914, %v917
      %vm919 = vcmp.eq.s32.totalorder %v246, 9
      %v920 = vstv %s874
      %v921 = vsel %vm919, %v920, 0.0
      %v922 = vadd.f32 %v918, %v921
      %924 = vrot.lane.b32.xlu0 %v521, 120
      %v925 = vpop.permute.xlu0 %924
      %v927 = vsub.f32 %v521, %v925
      %v928 = vand.u32 2147483647, %v927
      %vm929 = vcmp.gt.f32.partialorder %v521, 0.0
      %v930 = vsel %vm929, 1, 0
      %v931 = vcvt.s32.f32 %v930
      %v932 = vsel %vm540, %v928, 0.0
      %v933 = vsel %vm542, %v932, 0.0
      %934 = vadd.xlane.f32.xlu0 %v933
      %v935 = vpop.xlane.xlu0 %934
      %v936 = vrot.slane %v935, 4
      %v937 = vadd.f32 %v935, %v936
      %v938 = vrot.slane %v937, 2
      %v939 = vadd.f32 %v937, %v938
      %v940 = vrot.slane %v939, 1
      %v941 = vadd.f32 %v939, %v940
      %s942 = vtos %v941
      %s943 = smul.f32 %s942, 0.0625
      %945 = vrot.lane.b32.xlu0 %v931, 120
      %v946 = vpop.permute.xlu0 %945
      %v948 = vsel %vm540, %v946, 0.0
      %v949 = vsel %vm542, %v948, 0.0
      %950 = vadd.xlane.f32.xlu0 %v949
      %v951 = vpop.xlane.xlu0 %950
      %v952 = vrot.slane %v951, 4
      %v953 = vadd.f32 %v951, %v952
      %v954 = vrot.slane %v953, 2
      %v955 = vadd.f32 %v953, %v954
      %v956 = vrot.slane %v955, 1
      %v957 = vadd.f32 %v955, %v956
      %s958 = vtos %v957
      %v959 = vsel %vm571, %v928, 0.0
      %v960 = vsel %vm542, %v959, 0.0
      %961 = vadd.xlane.f32.xlu0 %v960
      %v962 = vpop.xlane.xlu0 %961
      %v963 = vrot.slane %v962, 4
      %v964 = vadd.f32 %v962, %v963
      %v965 = vrot.slane %v964, 2
      %v966 = vadd.f32 %v964, %v965
      %v967 = vrot.slane %v966, 1
      %v968 = vadd.f32 %v966, %v967
      %s969 = vtos %v968
      %s970 = smul.f32 %s969, 0.0625
      %v971 = vsel %vm571, %v946, 0.0
      %v972 = vsel %vm542, %v971, 0.0
      %973 = vadd.xlane.f32.xlu0 %v972
      %v974 = vpop.xlane.xlu0 %973
      %v975 = vrot.slane %v974, 4
      %v976 = vadd.f32 %v974, %v975
      %v977 = vrot.slane %v976, 2
      %v978 = vadd.f32 %v976, %v977
      %v979 = vrot.slane %v978, 1
      %v980 = vadd.f32 %v978, %v979
      %s981 = vtos %v980
      %v982 = vsel %vm602, %v521, 0
      %984 = vmatprep.subr.mxu0 0.0
      %985 = vmatpush1.msra.mxu0 0.0
      %986 = vmatprep.subr.mxu0 0.0
      %987 = vmatpush1.msra.mxu0 0.0
      %988 = vmatprep.subr.mxu0 0.0
      %989 = vmatpush1.msra.mxu0 0.0
      %990 = vmatprep.subr.mxu0 0.0
      %991 = vmatpush1.msra.mxu0 0.0
      %992 = vmatprep.subr.mxu0 0.0
      %993 = vmatpush1.msra.mxu0 0.0
      %994 = vmatprep.subr.mxu0 0.0
      %995 = vmatpush1.msra.mxu0 0.0
      %996 = vmatprep.subr.mxu0 0.0
      %997 = vmatpush1.msra.mxu0 0.0
      %998 = vmatprep.subr.mxu0 0.0
      %999 = vmatpush1.msra.mxu0 0.0
      %1000 = vmatprep.subr.mxu0 0.0
      %1001 = vmatpush1.msra.mxu0 0.0
      %1002 = vmatprep.subr.mxu0 0.0
      %1003 = vmatpush1.msra.mxu0 0.0
      %1004 = vmatprep.subr.mxu0 0.0
      %1005 = vmatpush1.msra.mxu0 0.0
      %1006 = vmatprep.subr.mxu0 0.0
      %1007 = vmatpush1.msra.mxu0 0.0
      %1008 = vmatprep.subr.mxu0 0.0
      %1009 = vmatpush1.msra.mxu0 0.0
      %1010 = vmatprep.subr.mxu0 0.0
      %1011 = vmatpush1.msra.mxu0 0.0
      %1012 = vmatprep.subr.mxu0 0.0
      %1013 = vmatpush1.msra.mxu0 0.0
      %1014 = vmatprep.subr.mxu0 0.0
      %1015 = vmatpush1.msra.mxu0 %v982
      %1016 = vmatprep.subr.mxu0 0.0
      %1017 = vmatpush2.msra.mxu0 0.0
      %1018 = vmatprep.subr.mxu0 0.0
      %1019 = vmatpush2.msra.mxu0 0.0
      %1020 = vmatprep.subr.mxu0 0.0
      %1021 = vmatpush2.msra.mxu0 0.0
      %1022 = vmatprep.subr.mxu0 0.0
      %1023 = vmatpush2.msra.mxu0 0.0
      %1024 = vmatprep.subr.mxu0 0.0
      %1025 = vmatpush2.msra.mxu0 0.0
      %1026 = vmatprep.subr.mxu0 0.0
      %1027 = vmatpush2.msra.mxu0 0.0
      %1028 = vmatprep.subr.mxu0 0.0
      %1029 = vmatpush2.msra.mxu0 0.0
      %1030 = vmatprep.subr.mxu0 0.0
      %1031 = vmatpush2.msra.mxu0 0.0
      %1032 = vmatprep.subr.mxu0 0.0
      %1033 = vmatpush2.msra.mxu0 0.0
      %1034 = vmatprep.subr.mxu0 0.0
      %1035 = vmatpush2.msra.mxu0 0.0
      %1036 = vmatprep.subr.mxu0 0.0
      %1037 = vmatpush2.msra.mxu0 0.0
      %1038 = vmatprep.subr.mxu0 0.0
      %1039 = vmatpush2.msra.mxu0 0.0
      %1040 = vmatprep.subr.mxu0 0.0
      %1041 = vmatpush2.msra.mxu0 0.0
      %1042 = vmatprep.subr.mxu0 0.0
      %1043 = vmatpush2.msra.mxu0 0.0
      %1044 = vmatprep.subr.mxu0 0.0
      %1045 = vmatpush2.msra.mxu0 0.0
      %1046 = vmatprep.subr.mxu0 0.0
      %1047 = vmatpush2.msra.mxu0 0.0
      %1048 = vmatprep.mubr.f32.mxu0 0.0
      %1049 = vmatmul.mubr.f32.gmra.mxu0 %v600
      %v1050 = vpop.f32.mrf.mxu0
      %v1051 = vadd.f32 0.0, %v1050
      %v1052 = vpop.f32.mrf.mxu0
      %1053 = vdwg.mxu0
      %v1055 = vsel %vm180, %v1051, 0
      %1057 = vmatprep.subr.mxu0 0.0
      %1058 = vmatpush1.msra.mxu0 0.0
      %1059 = vmatprep.subr.mxu0 0.0
      %1060 = vmatpush1.msra.mxu0 0.0
      %1061 = vmatprep.subr.mxu0 0.0
      %1062 = vmatpush1.msra.mxu0 0.0
      %1063 = vmatprep.subr.mxu0 0.0
      %1064 = vmatpush1.msra.mxu0 0.0
      %1065 = vmatprep.subr.mxu0 0.0
      %1066 = vmatpush1.msra.mxu0 0.0
      %1067 = vmatprep.subr.mxu0 0.0
      %1068 = vmatpush1.msra.mxu0 0.0
      %1069 = vmatprep.subr.mxu0 0.0
      %1070 = vmatpush1.msra.mxu0 0.0
      %1071 = vmatprep.subr.mxu0 0.0
      %1072 = vmatpush1.msra.mxu0 0.0
      %1073 = vmatprep.subr.mxu0 0.0
      %1074 = vmatpush1.msra.mxu0 0.0
      %1075 = vmatprep.subr.mxu0 0.0
      %1076 = vmatpush1.msra.mxu0 0.0
      %1077 = vmatprep.subr.mxu0 0.0
      %1078 = vmatpush1.msra.mxu0 0.0
      %1079 = vmatprep.subr.mxu0 0.0
      %1080 = vmatpush1.msra.mxu0 0.0
      %1081 = vmatprep.subr.mxu0 0.0
      %1082 = vmatpush1.msra.mxu0 0.0
      %1083 = vmatprep.subr.mxu0 0.0
      %1084 = vmatpush1.msra.mxu0 0.0
      %1085 = vmatprep.subr.mxu0 0.0
      %1086 = vmatpush1.msra.mxu0 %v597
      %1087 = vmatprep.subr.mxu0 0.0
      %1088 = vmatpush1.msra.mxu0 %v596
      %1089 = vmatprep.subr.mxu0 0.0
      %1090 = vmatpush2.msra.mxu0 0.0
      %1091 = vmatprep.subr.mxu0 0.0
      %1092 = vmatpush2.msra.mxu0 0.0
      %1093 = vmatprep.subr.mxu0 0.0
      %1094 = vmatpush2.msra.mxu0 0.0
      %1095 = vmatprep.subr.mxu0 0.0
      %1096 = vmatpush2.msra.mxu0 0.0
      %1097 = vmatprep.subr.mxu0 0.0
      %1098 = vmatpush2.msra.mxu0 0.0
      %1099 = vmatprep.subr.mxu0 0.0
      %1100 = vmatpush2.msra.mxu0 0.0
      %1101 = vmatprep.subr.mxu0 0.0
      %1102 = vmatpush2.msra.mxu0 0.0
      %1103 = vmatprep.subr.mxu0 0.0
      %1104 = vmatpush2.msra.mxu0 0.0
      %1105 = vmatprep.subr.mxu0 0.0
      %1106 = vmatpush2.msra.mxu0 0.0
      %1107 = vmatprep.subr.mxu0 0.0
      %1108 = vmatpush2.msra.mxu0 0.0
      %1109 = vmatprep.subr.mxu0 0.0
      %1110 = vmatpush2.msra.mxu0 0.0
      %1111 = vmatprep.subr.mxu0 0.0
      %1112 = vmatpush2.msra.mxu0 0.0
      %1113 = vmatprep.subr.mxu0 0.0
      %1114 = vmatpush2.msra.mxu0 0.0
      %1115 = vmatprep.subr.mxu0 0.0
      %1116 = vmatpush2.msra.mxu0 0.0
      %1117 = vmatprep.subr.mxu0 0.0
      %1118 = vmatpush2.msra.mxu0 0.0
      %1119 = vmatprep.subr.mxu0 0.0
      %1120 = vmatpush2.msra.mxu0 0.0
      %1121 = vmatprep.mubr.f32.mxu0 0.0
      %1122 = vmatmul.mubr.f32.gmra.mxu0 %v1055
      %v1123 = vpop.f32.mrf.mxu0
      %v1124 = vadd.f32 0.0, %v1123
      %v1125 = vpop.f32.mrf.mxu0
      %1126 = vdwg.mxu0
      %1128 = vrot.lane.b32.xlu0 %v1124, 122
      %v1129 = vpop.permute.xlu0 %1128
      %v1131 = vsub.f32 %v1124, %v1129
      %v1132 = vand.u32 2147483647, %v1131
      %vm1133 = vcmp.gt.f32.partialorder %v1124, 0.0
      %v1134 = vsel %vm1133, 1, 0
      %v1135 = vcvt.s32.f32 %v1134
      %v1136 = vsel %vm764, %v1132, 0.0
      %v1137 = vsel %vm766, %v1136, 0.0
      %1138 = vadd.xlane.f32.xlu0 %v1137
      %v1139 = vpop.xlane.xlu0 %1138
      %v1140 = vrot.slane %v1139, 4
      %v1141 = vadd.f32 %v1139, %v1140
      %v1142 = vrot.slane %v1141, 2
      %v1143 = vadd.f32 %v1141, %v1142
      %v1144 = vrot.slane %v1143, 1
      %v1145 = vadd.f32 %v1143, %v1144
      %s1146 = vtos %v1145
      %s1147 = smul.f32 %s1146, 0.00390625
      %1149 = vrot.lane.b32.xlu0 %v1135, 122
      %v1150 = vpop.permute.xlu0 %1149
      %v1152 = vsel %vm764, %v1150, 0.0
      %v1153 = vsel %vm766, %v1152, 0.0
      %1154 = vadd.xlane.f32.xlu0 %v1153
      %v1155 = vpop.xlane.xlu0 %1154
      %v1156 = vrot.slane %v1155, 4
      %v1157 = vadd.f32 %v1155, %v1156
      %v1158 = vrot.slane %v1157, 2
      %v1159 = vadd.f32 %v1157, %v1158
      %v1160 = vrot.slane %v1159, 1
      %v1161 = vadd.f32 %v1159, %v1160
      %s1162 = vtos %v1161
      %v1163 = vsel %vm795, %v1132, 0.0
      %v1164 = vsel %vm766, %v1163, 0.0
      %1165 = vadd.xlane.f32.xlu0 %v1164
      %v1166 = vpop.xlane.xlu0 %1165
      %v1167 = vrot.slane %v1166, 4
      %v1168 = vadd.f32 %v1166, %v1167
      %v1169 = vrot.slane %v1168, 2
      %v1170 = vadd.f32 %v1168, %v1169
      %v1171 = vrot.slane %v1170, 1
      %v1172 = vadd.f32 %v1170, %v1171
      %s1173 = vtos %v1172
      %s1174 = smul.f32 %s1173, 0.00390625
      %v1175 = vsel %vm795, %v1150, 0.0
      %v1176 = vsel %vm766, %v1175, 0.0
      %1177 = vadd.xlane.f32.xlu0 %v1176
      %v1178 = vpop.xlane.xlu0 %1177
      %v1179 = vrot.slane %v1178, 4
      %v1180 = vadd.f32 %v1178, %v1179
      %v1181 = vrot.slane %v1180, 2
      %v1182 = vadd.f32 %v1180, %v1181
      %v1183 = vrot.slane %v1182, 1
      %v1184 = vadd.f32 %v1182, %v1183
      %s1185 = vtos %v1184
      %v1186 = vsel %vm825, %v1132, 0.0
      %v1187 = vsel %vm766, %v1186, 0.0
      %1188 = vadd.xlane.f32.xlu0 %v1187
      %v1189 = vpop.xlane.xlu0 %1188
      %v1190 = vrot.slane %v1189, 4
      %v1191 = vadd.f32 %v1189, %v1190
      %v1192 = vrot.slane %v1191, 2
      %v1193 = vadd.f32 %v1191, %v1192
      %v1194 = vrot.slane %v1193, 1
      %v1195 = vadd.f32 %v1193, %v1194
      %s1196 = vtos %v1195
      %s1197 = smul.f32 %s1196, 0.015625
      %v1198 = vsel %vm825, %v1150, 0.0
      %v1199 = vsel %vm766, %v1198, 0.0
      %1200 = vadd.xlane.f32.xlu0 %v1199
      %v1201 = vpop.xlane.xlu0 %1200
      %v1202 = vrot.slane %v1201, 4
      %v1203 = vadd.f32 %v1201, %v1202
      %v1204 = vrot.slane %v1203, 2
      %v1205 = vadd.f32 %v1203, %v1204
      %v1206 = vrot.slane %v1205, 1
      %v1207 = vadd.f32 %v1205, %v1206
      %s1208 = vtos %v1207
      %v1209 = vsel %vm851, %v1132, 0.0
      %v1210 = vsel %vm766, %v1209, 0.0
      %1211 = vadd.xlane.f32.xlu0 %v1210
      %v1212 = vpop.xlane.xlu0 %1211
      %v1213 = vrot.slane %v1212, 4
      %v1214 = vadd.f32 %v1212, %v1213
      %v1215 = vrot.slane %v1214, 2
      %v1216 = vadd.f32 %v1214, %v1215
      %v1217 = vrot.slane %v1216, 1
      %v1218 = vadd.f32 %v1216, %v1217
      %s1219 = vtos %v1218
      %s1220 = smul.f32 %s1219, 0.015625
      %v1221 = vsel %vm851, %v1150, 0.0
      %v1222 = vsel %vm766, %v1221, 0.0
      %1223 = vadd.xlane.f32.xlu0 %v1222
      %v1224 = vpop.xlane.xlu0 %1223
      %v1225 = vrot.slane %v1224, 4
      %v1226 = vadd.f32 %v1224, %v1225
      %v1227 = vrot.slane %v1226, 2
      %v1228 = vadd.f32 %v1226, %v1227
      %v1229 = vrot.slane %v1228, 1
      %v1230 = vadd.f32 %v1228, %v1229
      %s1231 = vtos %v1230
      %v1232 = vstv %s943
      %v1233 = vsel %vm875, %v1232, 0.0
      %v1234 = vadd.f32 %v922, %v1233
      %v1235 = vstv %s958
      %v1236 = vsel %vm879, %v1235, 0.0
      %v1237 = vadd.f32 %v1234, %v1236
      %v1238 = vstv %s970
      %v1239 = vsel %vm883, %v1238, 0.0
      %v1240 = vadd.f32 %v1237, %v1239
      %v1241 = vstv %s981
      %v1242 = vsel %vm887, %v1241, 0.0
      %v1243 = vadd.f32 %v1240, %v1242
      %v1244 = vstv %s1147
      %v1245 = vsel %vm891, %v1244, 0.0
      %v1246 = vadd.f32 %v1243, %v1245
      %v1247 = vstv %s1162
      %v1248 = vsel %vm895, %v1247, 0.0
      %v1249 = vadd.f32 %v1246, %v1248
      %v1250 = vstv %s1174
      %v1251 = vsel %vm899, %v1250, 0.0
      %v1252 = vadd.f32 %v1249, %v1251
      %v1253 = vstv %s1185
      %v1254 = vsel %vm903, %v1253, 0.0
      %v1255 = vadd.f32 %v1252, %v1254
      %v1256 = vstv %s1197
      %v1257 = vsel %vm907, %v1256, 0.0
      %v1258 = vadd.f32 %v1255, %v1257
      %v1259 = vstv %s1208
      %v1260 = vsel %vm911, %v1259, 0.0
      %v1261 = vadd.f32 %v1258, %v1260
      %v1262 = vstv %s1220
      %v1263 = vsel %vm915, %v1262, 0.0
      %v1264 = vadd.f32 %v1261, %v1263
      %v1265 = vstv %s1231
      %v1266 = vsel %vm919, %v1265, 0.0
      %v1267 = vadd.f32 %v1264, %v1266
      %v1268 = vld [vmem:[#allocation6] sm:$0xff]
      %v1269 = vadd.f32 %v1268, %v1267
      %1270 = vst [vmem:[#allocation6] sm:$0xff] %v1269
    $region37: #{tpu_custom_call.1} parent=1 // pred_fallthru
      _
    // Predicated region
    $region38: #{tpu_custom_call.1} parent=1 // pred_check
      _
    $region39: #{tpu_custom_call.1} parent=1 // pred_check_branch
      %1272 = sbr.rel (0) target = $region41
    $region40: #{tpu_custom_call.1} parent=1 // pred_region
      %s1274 = ssub.s32 128, 128
      %1275 = vsyncadd [#allocation5], %s1274
      %s1277 = sshll.u32 [#allocation6], 4
      %s1278 = int_to_ptr.vmem [resolvable:$true] %s1277
      %1280 = dma.vmem_to_hbm [thread:$0]  %s1278, 128, %s6, [#allocation5]
    $region41: #{tpu_custom_call.1} parent=1 // pred_fallthru
      _
    // Predicated region
    $region42: #{tpu_custom_call.1} parent=1 // pred_check
      _
    $region43: #{tpu_custom_call.1} parent=1 // pred_check_branch
      %1282 = sbr.rel (0) target = $region45
    $region44: #{tpu_custom_call.1} parent=1 // pred_region
      %1283 = dma.done [#allocation5], 128
    $region45: #{tpu_custom_call.1} parent=1 // pred_fallthru
      _
    %1284 = vsyncpa [#allocation4], 1
    %1285 = vsyncpa [#allocation5], 1

</llo_original>
